<compile_context>
chip_gen: v7x
topology: tpu7x:2x2x1
jax: 0.10.0
libtpu: 0.0.40
codegen_flags: <defaults>
</compile_context>

<pallas_src>
import numpy as np
import jax
import jax.numpy as jnp
from jax.experimental import pallas as pl
from jax.experimental.pallas import tpu as pltpu

EPS = 1e-5
NEG_SLOPE = 0.01  # F.leaky_relu default


# ----------------------------------------------- wrapper-side constant prep --

def _band_weight(w, W):
    """OIHW (Cout,Cin,3,3) -> (3, W*Cin, W*Cout) banded matrices.

    Wb[dy][xin*Cin+ci, x*Cout+co] = w[co,ci,dy,dx] with xin = x+dx-1 when in
    range, so 'same' padding along W is folded into the weights.
    """
    W_ = W
    xin = np.arange(W_)[:, None, None]
    x = np.arange(W_)[None, :, None]
    dx = np.arange(3)[None, None, :]
    band = (xin == x + dx - 1).astype(np.float32)             # (W, W, 3)
    cout, cin = w.shape[0], w.shape[1]
    r = jnp.einsum('ijd,ocyd->yicjo', band, w.astype(jnp.float32))
    return r.reshape(3, W_ * cin, W_ * cout)


def _row_shift_mats(N, H):
    """(NH,NH) matrices: row y <- row y-1 / y+1 within each image, 0 at edges."""
    NH = N * H
    r = np.arange(NH)
    up = np.zeros((NH, NH), np.float32)
    ok = (r % H) != 0
    up[r[ok], r[ok] - 1] = 1.0
    dn = np.zeros((NH, NH), np.float32)
    ok = (r % H) != (H - 1)
    dn[r[ok], r[ok] + 1] = 1.0
    return up, dn


def _pool_select_mats(N, H, W, C):
    """Row / lane-block selectors for a 2x2 stride-2 max pool."""
    H2, W2 = H // 2, W // 2
    rp = np.arange(N * H2)
    n, y2 = rp // H2, rp % H2
    re = np.zeros((N * H2, N * H), np.float32)
    ro = np.zeros((N * H2, N * H), np.float32)
    re[rp, n * H + 2 * y2] = 1.0
    ro[rp, n * H + 2 * y2 + 1] = 1.0
    cp = np.arange(W2 * C)
    x2, c = cp // C, cp % C
    ce = np.zeros((W * C, W2 * C), np.float32)
    co = np.zeros((W * C, W2 * C), np.float32)
    ce[(2 * x2) * C + c, cp] = 1.0
    co[(2 * x2 + 1) * C + c, cp] = 1.0
    return re, ro, ce, co


def _channel_group_mat(W, C, inv_count):
    """G[l,l'] = inv_count iff lanes l, l' hold the same channel.

    Left-multiplying a (1, W*C) row of per-lane sums by G yields the
    per-channel mean broadcast back to every lane holding that channel.
    """
    l = np.arange(W * C)
    return (l[:, None] % C == l[None, :] % C).astype(np.float32) * inv_count


# ------------------------------------------------------------------ forward --

def encoder_block_forward(x_nchw, params):
    """params = (w1, b1, g1, be1, w2, b2, g2, be2); conv weights in OIHW."""
    w1, b1, g1, be1, w2, b2, g2, be2 = params
    N, Cin, H, W = x_nchw.shape
    Cout = w1.shape[0]
    assert H % 2 == 0 and W % 2 == 0, "2x2 max-pool layout assumes even H, W"
    H2, W2 = H // 2, W // 2
    NH, NP = N * H, N * H2
    WCin, WCout, WC2 = W * Cin, W * Cout, W2 * Cout
    inv_count = 1.0 / float(N * H * W)
    f32 = jnp.float32

    # lane-dense input layout: NCHW -> (N*H, W*Cin)
    x2d = jnp.transpose(x_nchw, (0, 2, 3, 1)).reshape(NH, WCin).astype(f32)

    # constant helper matrices (tiny, built once per call)
    wb1 = _band_weight(w1, W)                        # (3, W*Cin,  W*Cout)
    wb2 = _band_weight(w2, W)                        # (3, W*Cout, W*Cout)
    s_up, s_dn = (jnp.asarray(m) for m in _row_shift_mats(N, H))
    re, ro, ce, co = (jnp.asarray(m) for m in _pool_select_mats(N, H, W, Cout))
    gmat = jnp.asarray(_channel_group_mat(W, Cout, inv_count))

    tile_row = lambda v: jnp.tile(v.astype(f32), W).reshape(1, WCout)
    b1r, g1r, be1r = tile_row(b1), tile_row(g1), tile_row(be1)
    b2r, g2r, be2r = tile_row(b2), tile_row(g2), tile_row(be2)

    # ---------------------------------------------------------------- kernel
    def kernel(x_ref, wb1_ref, b1_ref, g1_ref, be1_ref,
               wb2_ref, b2_ref, g2_ref, be2_ref,
               gmat_ref, s_up_ref, s_dn_ref,
               re_ref, ro_ref, ce_ref, co_ref,
               x_out_ref, p_out_ref):
        gm = gmat_ref[...]        # (WC, WC), already scaled by 1/(N*H*W)
        su = s_up_ref[...]
        sd = s_dn_ref[...]

        def conv_bn_leaky(h_in, wb_ref, b_row, g_row, be_row):
            # 3x3 'same' conv as three MXU matmuls (one per kernel row dy).
            up = jnp.dot(su, h_in, preferred_element_type=f32)   # row y-1 (0 at top)
            dn = jnp.dot(sd, h_in, preferred_element_type=f32)   # row y+1 (0 at bottom)
            h = (jnp.dot(up, wb_ref[0], preferred_element_type=f32)
                 + jnp.dot(h_in, wb_ref[1], preferred_element_type=f32)
                 + jnp.dot(dn, wb_ref[2], preferred_element_type=f32))
            h = h + b_row                                        # conv bias

            # Training-mode BatchNorm, single-pass batch statistics.
            # Reduce over rows first (XLU), then one tiny grouping matmul per
            # statistic to sum strided per-channel lanes AND broadcast the
            # result back to every lane of that channel.
            sum_h = jnp.sum(h, axis=0, keepdims=True)            # (1, WC)
            sum_hh = jnp.sum(h * h, axis=0, keepdims=True)       # (1, WC)
            mean = jnp.dot(sum_h, gm, preferred_element_type=f32)
            ex2 = jnp.dot(sum_hh, gm, preferred_element_type=f32)
            var = jnp.maximum(ex2 - mean * mean, 0.0)
            scale = g_row * jax.lax.rsqrt(var + EPS)
            shift = be_row - mean * scale
            hn = h * scale + shift
            return jnp.where(hn > 0, hn, NEG_SLOPE * hn)         # leaky_relu

        h1 = conv_bn_leaky(x_ref[...], wb1_ref,
                           b1_ref[...], g1_ref[...], be1_ref[...])
        h2 = conv_bn_leaky(h1, wb2_ref,
                           b2_ref[...], g2_ref[...], be2_ref[...])
        x_out_ref[...] = h2                                      # one dense store

        # 2x2 max-pool, stride 2: row-pair max then lane-block (W-pair) max,
        # both via constant selection matmuls; one dense store.
        rmax = jnp.maximum(
            jnp.dot(re_ref[...], h2, preferred_element_type=f32),
            jnp.dot(ro_ref[...], h2, preferred_element_type=f32))
        p = jnp.maximum(
            jnp.dot(rmax, ce_ref[...], preferred_element_type=f32),
            jnp.dot(rmax, co_ref[...], preferred_element_type=f32))
        p_out_ref[...] = p

        # TODO(synk): BatchNorm running_mean/running_var buffer updates
        # (training side effect) are not materialized; they do not affect the
        # returned tensors.

    vmem = pl.BlockSpec(memory_space=pltpu.MemorySpace.VMEM)
    x_out2d, p_out2d = pl.pallas_call(
        kernel,
        out_shape=(jax.ShapeDtypeStruct((NH, WCout), f32),
                   jax.ShapeDtypeStruct((NP, WC2), f32)),
        in_specs=[vmem] * 16,
        out_specs=(vmem, vmem),
    )(x2d, wb1, b1r, g1r, be1r, wb2, b2r, g2r, be2r,
      gmat, s_up, s_dn, re, ro, ce, co)

    # back to PyTorch NCHW convention (pure layout glue outside the kernel)
    x_out = jnp.transpose(x_out2d.reshape(N, H, W, Cout), (0, 3, 1, 2))
    p_out = jnp.transpose(p_out2d.reshape(N, H2, W2, Cout), (0, 3, 1, 2))
    return x_out, p_out


# -------------------------------------------------------- pure-JAX reference

def encoder_block_reference(x, params):
    w1, b1, g1, be1, w2, b2, g2, be2 = params

    def block(x, w, b, g, be):
        y = jax.lax.conv_general_dilated(
            x, w, window_strides=(1, 1), padding='SAME',
            dimension_numbers=('NCHW', 'OIHW', 'NCHW'))
        y = y + b[None, :, None, None]
        mean = jnp.mean(y, axis=(0, 2, 3), keepdims=True)
        var = jnp.mean((y - mean) ** 2, axis=(0, 2, 3), keepdims=True)
        y = ((y - mean) / jnp.sqrt(var + EPS)) * g[None, :, None, None] \
            + be[None, :, None, None]
        return jnp.where(y > 0, y, NEG_SLOPE * y)

    x2 = block(block(x, w1, b1, g1, be1), w2, b2, g2, be2)
    p = jax.lax.reduce_window(x2, -jnp.inf, jax.lax.max,
                              (1, 1, 2, 2), (1, 1, 2, 2), 'VALID')
    return x2, p


# ------------------------------------------------------------------- main --

if __name__ == "__main__":
    N, in_c, out_c, H, W = 2, 4, 8, 16, 16
    key = jax.random.PRNGKey(0)
    ks = jax.random.split(key, 9)

    x = jax.random.normal(ks[0], (N, in_c, H, W), jnp.float32)
    w1 = 0.1 * jax.random.normal(ks[1], (out_c, in_c, 3, 3), jnp.float32)
    b1 = 0.1 * jax.random.normal(ks[2], (out_c,), jnp.float32)
    g1 = 1.0 + 0.1 * jax.random.normal(ks[3], (out_c,), jnp.float32)
    be1 = 0.1 * jax.random.normal(ks[4], (out_c,), jnp.float32)
    w2 = 0.1 * jax.random.normal(ks[5], (out_c, out_c, 3, 3), jnp.float32)
    b2 = 0.1 * jax.random.normal(ks[6], (out_c,), jnp.float32)
    g2 = 1.0 + 0.1 * jax.random.normal(ks[7], (out_c,), jnp.float32)
    be2 = 0.1 * jax.random.normal(ks[8], (out_c,), jnp.float32)
    params = (w1, b1, g1, be1, w2, b2, g2, be2)

    x_out, p_out = jax.block_until_ready(encoder_block_forward(x, params))

    assert x_out.shape == (N, out_c, H, W)
    assert p_out.shape == (N, out_c, H // 2, W // 2)

    x_ref, p_ref = encoder_block_reference(x, params)
    assert jnp.allclose(x_out, x_ref, atol=2e-3, rtol=2e-3), "x mismatch"
    assert jnp.allclose(p_out, p_ref, atol=2e-3, rtol=2e-3), "p mismatch"

    print("KERNEL_OK")
</pallas_src>

<mosaic_0001>
module attributes {stable_mosaic.version = 11 : i64} {
  func.func @kernel(%arg0: memref<32x64xf32, #tpu.memory_space<vmem>>, %arg1: memref<3x64x128xf32, #tpu.memory_space<vmem>>, %arg2: memref<1x128xf32, #tpu.memory_space<vmem>>, %arg3: memref<1x128xf32, #tpu.memory_space<vmem>>, %arg4: memref<1x128xf32, #tpu.memory_space<vmem>>, %arg5: memref<3x128x128xf32, #tpu.memory_space<vmem>>, %arg6: memref<1x128xf32, #tpu.memory_space<vmem>>, %arg7: memref<1x128xf32, #tpu.memory_space<vmem>>, %arg8: memref<1x128xf32, #tpu.memory_space<vmem>>, %arg9: memref<128x128xf32, #tpu.memory_space<vmem>>, %arg10: memref<32x32xf32, #tpu.memory_space<vmem>>, %arg11: memref<32x32xf32, #tpu.memory_space<vmem>>, %arg12: memref<16x32xf32, #tpu.memory_space<vmem>>, %arg13: memref<16x32xf32, #tpu.memory_space<vmem>>, %arg14: memref<128x64xf32, #tpu.memory_space<vmem>>, %arg15: memref<128x64xf32, #tpu.memory_space<vmem>>, %arg16: memref<32x128xf32, #tpu.memory_space<vmem>>, %arg17: memref<16x64xf32, #tpu.memory_space<vmem>>) attributes {dimension_semantics = [], scalar_prefetch = 0 : i64, scratch_operands = 0 : i64, tpu.core_type = #tpu.core_type<tc>} {
    %c0 = arith.constant 0 : index
    %c0_0 = arith.constant 0 : index
    %0 = vector.load %arg9[%c0, %c0_0] : memref<128x128xf32, #tpu.memory_space<vmem>>, vector<128x128xf32>
    %c0_1 = arith.constant 0 : index
    %c0_2 = arith.constant 0 : index
    %1 = vector.load %arg10[%c0_1, %c0_2] : memref<32x32xf32, #tpu.memory_space<vmem>>, vector<32x32xf32>
    %c0_3 = arith.constant 0 : index
    %c0_4 = arith.constant 0 : index
    %2 = vector.load %arg11[%c0_3, %c0_4] : memref<32x32xf32, #tpu.memory_space<vmem>>, vector<32x32xf32>
    %c0_5 = arith.constant 0 : index
    %c0_6 = arith.constant 0 : index
    %3 = vector.load %arg0[%c0_5, %c0_6] : memref<32x64xf32, #tpu.memory_space<vmem>>, vector<32x64xf32>
    %c0_7 = arith.constant 0 : index
    %c0_8 = arith.constant 0 : index
    %4 = vector.load %arg2[%c0_7, %c0_8] : memref<1x128xf32, #tpu.memory_space<vmem>>, vector<1x128xf32>
    %c0_9 = arith.constant 0 : index
    %c0_10 = arith.constant 0 : index
    %5 = vector.load %arg3[%c0_9, %c0_10] : memref<1x128xf32, #tpu.memory_space<vmem>>, vector<1x128xf32>
    %c0_11 = arith.constant 0 : index
    %c0_12 = arith.constant 0 : index
    %6 = vector.load %arg4[%c0_11, %c0_12] : memref<1x128xf32, #tpu.memory_space<vmem>>, vector<1x128xf32>
    %cst = arith.constant dense<0.000000e+00> : vector<32x64xf32>
    %7 = tpu.matmul %1, %3, %cst {dimension_numbers = #tpu.dot_dimension_numbers<[1], [0], [0], [1], [0, 0, 1, 1], [], []>} : vector<32x32xf32>, vector<32x64xf32>, vector<32x64xf32> -> vector<32x64xf32>
    %cst_13 = arith.constant dense<0.000000e+00> : vector<32x64xf32>
    %8 = tpu.matmul %2, %3, %cst_13 {dimension_numbers = #tpu.dot_dimension_numbers<[1], [0], [0], [1], [0, 0, 1, 1], [], []>} : vector<32x32xf32>, vector<32x64xf32>, vector<32x64xf32> -> vector<32x64xf32>
    %c0_14 = arith.constant 0 : index
    %c0_15 = arith.constant 0 : index
    %c0_16 = arith.constant 0 : index
    %9 = vector.load %arg1[%c0_14, %c0_15, %c0_16] : memref<3x64x128xf32, #tpu.memory_space<vmem>>, vector<1x64x128xf32>
    %10 = vector.shape_cast %9 : vector<1x64x128xf32> to vector<64x128xf32>
    %cst_17 = arith.constant dense<0.000000e+00> : vector<32x128xf32>
    %11 = tpu.matmul %7, %10, %cst_17 {dimension_numbers = #tpu.dot_dimension_numbers<[1], [0], [0], [1], [0, 0, 1, 1], [], []>} : vector<32x64xf32>, vector<64x128xf32>, vector<32x128xf32> -> vector<32x128xf32>
    %c1 = arith.constant 1 : index
    %c0_18 = arith.constant 0 : index
    %c0_19 = arith.constant 0 : index
    %12 = vector.load %arg1[%c1, %c0_18, %c0_19] : memref<3x64x128xf32, #tpu.memory_space<vmem>>, vector<1x64x128xf32>
    %13 = vector.shape_cast %12 : vector<1x64x128xf32> to vector<64x128xf32>
    %cst_20 = arith.constant dense<0.000000e+00> : vector<32x128xf32>
    %14 = tpu.matmul %3, %13, %cst_20 {dimension_numbers = #tpu.dot_dimension_numbers<[1], [0], [0], [1], [0, 0, 1, 1], [], []>} : vector<32x64xf32>, vector<64x128xf32>, vector<32x128xf32> -> vector<32x128xf32>
    %15 = arith.addf %11, %14 : vector<32x128xf32>
    %c2 = arith.constant 2 : index
    %c0_21 = arith.constant 0 : index
    %c0_22 = arith.constant 0 : index
    %16 = vector.load %arg1[%c2, %c0_21, %c0_22] : memref<3x64x128xf32, #tpu.memory_space<vmem>>, vector<1x64x128xf32>
    %17 = vector.shape_cast %16 : vector<1x64x128xf32> to vector<64x128xf32>
    %cst_23 = arith.constant dense<0.000000e+00> : vector<32x128xf32>
    %18 = tpu.matmul %8, %17, %cst_23 {dimension_numbers = #tpu.dot_dimension_numbers<[1], [0], [0], [1], [0, 0, 1, 1], [], []>} : vector<32x64xf32>, vector<64x128xf32>, vector<32x128xf32> -> vector<32x128xf32>
    %19 = arith.addf %15, %18 : vector<32x128xf32>
    %20 = vector.broadcast %4 : vector<1x128xf32> to vector<32x128xf32>
    %21 = arith.addf %19, %20 : vector<32x128xf32>
    %cst_24 = arith.constant dense<0.000000e+00> : vector<128xf32>
    %22 = vector.multi_reduction <add>, %21, %cst_24 [0] : vector<32x128xf32> to vector<128xf32>
    %23 = vector.shape_cast %22 : vector<128xf32> to vector<1x128xf32>
    %24 = arith.mulf %21, %21 : vector<32x128xf32>
    %cst_25 = arith.constant dense<0.000000e+00> : vector<128xf32>
    %25 = vector.multi_reduction <add>, %24, %cst_25 [0] : vector<32x128xf32> to vector<128xf32>
    %26 = vector.shape_cast %25 : vector<128xf32> to vector<1x128xf32>
    %cst_26 = arith.constant dense<0.000000e+00> : vector<1x128xf32>
    %27 = tpu.matmul %23, %0, %cst_26 {dimension_numbers = #tpu.dot_dimension_numbers<[1], [0], [0], [1], [0, 0, 1, 1], [], []>} : vector<1x128xf32>, vector<128x128xf32>, vector<1x128xf32> -> vector<1x128xf32>
    %cst_27 = arith.constant dense<0.000000e+00> : vector<1x128xf32>
    %28 = tpu.matmul %26, %0, %cst_27 {dimension_numbers = #tpu.dot_dimension_numbers<[1], [0], [0], [1], [0, 0, 1, 1], [], []>} : vector<1x128xf32>, vector<128x128xf32>, vector<1x128xf32> -> vector<1x128xf32>
    %29 = arith.mulf %27, %27 : vector<1x128xf32>
    %30 = arith.subf %28, %29 : vector<1x128xf32>
    %cst_28 = arith.constant 0.000000e+00 : f32
    %31 = vector.broadcast %cst_28 : f32 to vector<1x128xf32>
    %32 = arith.maximumf %30, %31 : vector<1x128xf32>
    %cst_29 = arith.constant 9.99999974E-6 : f32
    %33 = vector.broadcast %cst_29 : f32 to vector<1x128xf32>
    %34 = arith.addf %32, %33 : vector<1x128xf32>
    %35 = math.rsqrt %34 : vector<1x128xf32>
    %36 = arith.mulf %5, %35 : vector<1x128xf32>
    %37 = arith.mulf %27, %36 : vector<1x128xf32>
    %38 = arith.subf %6, %37 : vector<1x128xf32>
    %39 = vector.broadcast %36 : vector<1x128xf32> to vector<32x128xf32>
    %40 = arith.mulf %21, %39 : vector<32x128xf32>
    %41 = vector.broadcast %38 : vector<1x128xf32> to vector<32x128xf32>
    %42 = arith.addf %40, %41 : vector<32x128xf32>
    %cst_30 = arith.constant 0.000000e+00 : f32
    %43 = vector.broadcast %cst_30 : f32 to vector<32x128xf32>
    %44 = arith.cmpf ogt, %42, %43 : vector<32x128xf32>
    %cst_31 = arith.constant 0.00999999977 : f32
    %45 = vector.broadcast %cst_31 : f32 to vector<32x128xf32>
    %46 = arith.mulf %45, %42 : vector<32x128xf32>
    %47 = arith.select %44, %42, %46 : vector<32x128xi1>, vector<32x128xf32>
    %c0_32 = arith.constant 0 : index
    %c0_33 = arith.constant 0 : index
    %48 = vector.load %arg6[%c0_32, %c0_33] : memref<1x128xf32, #tpu.memory_space<vmem>>, vector<1x128xf32>
    %c0_34 = arith.constant 0 : index
    %c0_35 = arith.constant 0 : index
    %49 = vector.load %arg7[%c0_34, %c0_35] : memref<1x128xf32, #tpu.memory_space<vmem>>, vector<1x128xf32>
    %c0_36 = arith.constant 0 : index
    %c0_37 = arith.constant 0 : index
    %50 = vector.load %arg8[%c0_36, %c0_37] : memref<1x128xf32, #tpu.memory_space<vmem>>, vector<1x128xf32>
    %cst_38 = arith.constant dense<0.000000e+00> : vector<32x128xf32>
    %51 = tpu.matmul %1, %47, %cst_38 {dimension_numbers = #tpu.dot_dimension_numbers<[1], [0], [0], [1], [0, 0, 1, 1], [], []>} : vector<32x32xf32>, vector<32x128xf32>, vector<32x128xf32> -> vector<32x128xf32>
    %cst_39 = arith.constant dense<0.000000e+00> : vector<32x128xf32>
    %52 = tpu.matmul %2, %47, %cst_39 {dimension_numbers = #tpu.dot_dimension_numbers<[1], [0], [0], [1], [0, 0, 1, 1], [], []>} : vector<32x32xf32>, vector<32x128xf32>, vector<32x128xf32> -> vector<32x128xf32>
    %c0_40 = arith.constant 0 : index
    %c0_41 = arith.constant 0 : index
    %c0_42 = arith.constant 0 : index
    %53 = vector.load %arg5[%c0_40, %c0_41, %c0_42] : memref<3x128x128xf32, #tpu.memory_space<vmem>>, vector<1x128x128xf32>
    %54 = vector.shape_cast %53 : vector<1x128x128xf32> to vector<128x128xf32>
    %cst_43 = arith.constant dense<0.000000e+00> : vector<32x128xf32>
    %55 = tpu.matmul %51, %54, %cst_43 {dimension_numbers = #tpu.dot_dimension_numbers<[1], [0], [0], [1], [0, 0, 1, 1], [], []>} : vector<32x128xf32>, vector<128x128xf32>, vector<32x128xf32> -> vector<32x128xf32>
    %c1_44 = arith.constant 1 : index
    %c0_45 = arith.constant 0 : index
    %c0_46 = arith.constant 0 : index
    %56 = vector.load %arg5[%c1_44, %c0_45, %c0_46] : memref<3x128x128xf32, #tpu.memory_space<vmem>>, vector<1x128x128xf32>
    %57 = vector.shape_cast %56 : vector<1x128x128xf32> to vector<128x128xf32>
    %cst_47 = arith.constant dense<0.000000e+00> : vector<32x128xf32>
    %58 = tpu.matmul %47, %57, %cst_47 {dimension_numbers = #tpu.dot_dimension_numbers<[1], [0], [0], [1], [0, 0, 1, 1], [], []>} : vector<32x128xf32>, vector<128x128xf32>, vector<32x128xf32> -> vector<32x128xf32>
    %59 = arith.addf %55, %58 : vector<32x128xf32>
    %c2_48 = arith.constant 2 : index
    %c0_49 = arith.constant 0 : index
    %c0_50 = arith.constant 0 : index
    %60 = vector.load %arg5[%c2_48, %c0_49, %c0_50] : memref<3x128x128xf32, #tpu.memory_space<vmem>>, vector<1x128x128xf32>
    %61 = vector.shape_cast %60 : vector<1x128x128xf32> to vector<128x128xf32>
    %cst_51 = arith.constant dense<0.000000e+00> : vector<32x128xf32>
    %62 = tpu.matmul %52, %61, %cst_51 {dimension_numbers = #tpu.dot_dimension_numbers<[1], [0], [0], [1], [0, 0, 1, 1], [], []>} : vector<32x128xf32>, vector<128x128xf32>, vector<32x128xf32> -> vector<32x128xf32>
    %63 = arith.addf %59, %62 : vector<32x128xf32>
    %64 = vector.broadcast %48 : vector<1x128xf32> to vector<32x128xf32>
    %65 = arith.addf %63, %64 : vector<32x128xf32>
    %cst_52 = arith.constant dense<0.000000e+00> : vector<128xf32>
    %66 = vector.multi_reduction <add>, %65, %cst_52 [0] : vector<32x128xf32> to vector<128xf32>
    %67 = vector.shape_cast %66 : vector<128xf32> to vector<1x128xf32>
    %68 = arith.mulf %65, %65 : vector<32x128xf32>
    %cst_53 = arith.constant dense<0.000000e+00> : vector<128xf32>
    %69 = vector.multi_reduction <add>, %68, %cst_53 [0] : vector<32x128xf32> to vector<128xf32>
    %70 = vector.shape_cast %69 : vector<128xf32> to vector<1x128xf32>
    %cst_54 = arith.constant dense<0.000000e+00> : vector<1x128xf32>
    %71 = tpu.matmul %67, %0, %cst_54 {dimension_numbers = #tpu.dot_dimension_numbers<[1], [0], [0], [1], [0, 0, 1, 1], [], []>} : vector<1x128xf32>, vector<128x128xf32>, vector<1x128xf32> -> vector<1x128xf32>
    %cst_55 = arith.constant dense<0.000000e+00> : vector<1x128xf32>
    %72 = tpu.matmul %70, %0, %cst_55 {dimension_numbers = #tpu.dot_dimension_numbers<[1], [0], [0], [1], [0, 0, 1, 1], [], []>} : vector<1x128xf32>, vector<128x128xf32>, vector<1x128xf32> -> vector<1x128xf32>
    %73 = arith.mulf %71, %71 : vector<1x128xf32>
    %74 = arith.subf %72, %73 : vector<1x128xf32>
    %cst_56 = arith.constant 0.000000e+00 : f32
    %75 = vector.broadcast %cst_56 : f32 to vector<1x128xf32>
    %76 = arith.maximumf %74, %75 : vector<1x128xf32>
    %cst_57 = arith.constant 9.99999974E-6 : f32
    %77 = vector.broadcast %cst_57 : f32 to vector<1x128xf32>
    %78 = arith.addf %76, %77 : vector<1x128xf32>
    %79 = math.rsqrt %78 : vector<1x128xf32>
    %80 = arith.mulf %49, %79 : vector<1x128xf32>
    %81 = arith.mulf %71, %80 : vector<1x128xf32>
    %82 = arith.subf %50, %81 : vector<1x128xf32>
    %83 = vector.broadcast %80 : vector<1x128xf32> to vector<32x128xf32>
    %84 = arith.mulf %65, %83 : vector<32x128xf32>
    %85 = vector.broadcast %82 : vector<1x128xf32> to vector<32x128xf32>
    %86 = arith.addf %84, %85 : vector<32x128xf32>
    %cst_58 = arith.constant 0.000000e+00 : f32
    %87 = vector.broadcast %cst_58 : f32 to vector<32x128xf32>
    %88 = arith.cmpf ogt, %86, %87 : vector<32x128xf32>
    %cst_59 = arith.constant 0.00999999977 : f32
    %89 = vector.broadcast %cst_59 : f32 to vector<32x128xf32>
    %90 = arith.mulf %89, %86 : vector<32x128xf32>
    %91 = arith.select %88, %86, %90 : vector<32x128xi1>, vector<32x128xf32>
    %c0_60 = arith.constant 0 : index
    %c0_61 = arith.constant 0 : index
    %92 = vector.load %arg16[%c0_60, %c0_61] : memref<32x128xf32, #tpu.memory_space<vmem>>, vector<32x128xf32>
    tpu.vector_store %arg16[%c0_60, %c0_61], %91 {strides = array<i32>} : memref<32x128xf32, #tpu.memory_space<vmem>>, vector<32x128xf32>,
    %c0_62 = arith.constant 0 : index
    %c0_63 = arith.constant 0 : index
    %93 = vector.load %arg12[%c0_62, %c0_63] : memref<16x32xf32, #tpu.memory_space<vmem>>, vector<16x32xf32>
    %cst_64 = arith.constant dense<0.000000e+00> : vector<16x128xf32>
    %94 = tpu.matmul %93, %91, %cst_64 {dimension_numbers = #tpu.dot_dimension_numbers<[1], [0], [0], [1], [0, 0, 1, 1], [], []>} : vector<16x32xf32>, vector<32x128xf32>, vector<16x128xf32> -> vector<16x128xf32>
    %c0_65 = arith.constant 0 : index
    %c0_66 = arith.constant 0 : index
    %95 = vector.load %arg13[%c0_65, %c0_66] : memref<16x32xf32, #tpu.memory_space<vmem>>, vector<16x32xf32>
    %cst_67 = arith.constant dense<0.000000e+00> : vector<16x128xf32>
    %96 = tpu.matmul %95, %91, %cst_67 {dimension_numbers = #tpu.dot_dimension_numbers<[1], [0], [0], [1], [0, 0, 1, 1], [], []>} : vector<16x32xf32>, vector<32x128xf32>, vector<16x128xf32> -> vector<16x128xf32>
    %97 = arith.maximumf %94, %96 : vector<16x128xf32>
    %c0_68 = arith.constant 0 : index
    %c0_69 = arith.constant 0 : index
    %98 = vector.load %arg14[%c0_68, %c0_69] : memref<128x64xf32, #tpu.memory_space<vmem>>, vector<128x64xf32>
    %cst_70 = arith.constant dense<0.000000e+00> : vector<16x64xf32>
    %99 = tpu.matmul %97, %98, %cst_70 {dimension_numbers = #tpu.dot_dimension_numbers<[1], [0], [0], [1], [0, 0, 1, 1], [], []>} : vector<16x128xf32>, vector<128x64xf32>, vector<16x64xf32> -> vector<16x64xf32>
    %c0_71 = arith.constant 0 : index
    %c0_72 = arith.constant 0 : index
    %100 = vector.load %arg15[%c0_71, %c0_72] : memref<128x64xf32, #tpu.memory_space<vmem>>, vector<128x64xf32>
    %cst_73 = arith.constant dense<0.000000e+00> : vector<16x64xf32>
    %101 = tpu.matmul %97, %100, %cst_73 {dimension_numbers = #tpu.dot_dimension_numbers<[1], [0], [0], [1], [0, 0, 1, 1], [], []>} : vector<16x128xf32>, vector<128x64xf32>, vector<16x64xf32> -> vector<16x64xf32>
    %102 = arith.maximumf %99, %101 : vector<16x64xf32>
    %c0_74 = arith.constant 0 : index
    %c0_75 = arith.constant 0 : index
    %103 = vector.load %arg17[%c0_74, %c0_75] : memref<16x64xf32, #tpu.memory_space<vmem>>, vector<16x64xf32>
    tpu.vector_store %arg17[%c0_74, %c0_75], %102 {strides = array<i32>} : memref<16x64xf32, #tpu.memory_space<vmem>>, vector<16x64xf32>,
    return
  }
}

</mosaic_0001>

<llo_original>
// kernel: tpu_custom_call.1
$region0: #{tpu_custom_call.1}
  #allocation0 [shape = 'u32[]', space=smem, size = 0x4, offset = 0x4, fixed_abs, tag = 'smem constant byte address 0x4 - core index']
  #allocation1 [shape = 'u32[144,128]{1,0:T(1,128)}', space=vmem, size = 0x12000, scoped, tag = 'internal scratch']
  %s0 = inlined_call_operand.hbm [shape: f32[32,64], index: 0, kind: input, shape index: {}]
  %s1 = inlined_call_operand.hbm [shape: f32[3,64,128], index: 1, kind: input, shape index: {}]
  %s2 = inlined_call_operand.vmem [shape: f32[1,128], index: 2, kind: input, shape index: {}]
  %s3 = inlined_call_operand.vmem [shape: f32[1,128], index: 3, kind: input, shape index: {}]
  %s4 = inlined_call_operand.vmem [shape: f32[1,128], index: 4, kind: input, shape index: {}]
  %s5 = inlined_call_operand.vmem [shape: f32[3,128,128], index: 5, kind: input, shape index: {}]
  %s6 = inlined_call_operand.vmem [shape: f32[1,128], index: 6, kind: input, shape index: {}]
  %s7 = inlined_call_operand.vmem [shape: f32[1,128], index: 7, kind: input, shape index: {}]
  %s8 = inlined_call_operand.hbm [shape: f32[1,128], index: 8, kind: input, shape index: {}]
  %s9 = inlined_call_operand.hbm [shape: f32[128,128], index: 9, kind: input, shape index: {}]
  %s10 = inlined_call_operand.vmem [shape: f32[32,32], index: 10, kind: input, shape index: {}]
  %s11 = inlined_call_operand.hbm [shape: f32[32,32], index: 11, kind: input, shape index: {}]
  %s12 = inlined_call_operand.hbm [shape: f32[16,32], index: 12, kind: input, shape index: {}]
  %s13 = inlined_call_operand.hbm [shape: f32[16,32], index: 13, kind: input, shape index: {}]
  %s14 = inlined_call_operand.vmem [shape: f32[128,64], index: 14, kind: input, shape index: {}]
  %s15 = inlined_call_operand.vmem [shape: f32[128,64], index: 15, kind: input, shape index: {}]
  %s16 = inlined_call_operand.hbm [shape: f32[32,128], index: 16, kind: output, shape index: {0}]
  %s17 = inlined_call_operand.hbm [shape: f32[16,64], index: 17, kind: output, shape index: {1}]
  %18 = xla_tuple %s16, %s17
  %s19 = sld [smem:[#allocation0]]
  $region110: #{tpu_custom_call.1} parent=0
    _
  %s21 = ssub.s32 1, %s19
  %s22 = scalar_select 0, %s21, %s19
  $region1: #{tpu_custom_call.1} parent=0
    #allocation2 [shape = 'u8[16384]{0}', space=vmem, size = 0x4000, scoped, tag = 'input window, operand 0, single buffered']
    #allocation3 [shape = 's32[1]{0}', space=sflag, size = 0x4, scoped, tag = 'scoped memory for tpu_custom_call.1']
    #allocation4 [shape = 's32[1]{0}', space=sflag, size = 0x4, scoped, tag = 'scoped memory for tpu_custom_call.1']
    #allocation5 [shape = 'u8[98304]{0}', space=vmem, size = 0x18000, scoped, tag = 'input window, operand 1, single buffered']
    #allocation6 [shape = 's32[1]{0}', space=sflag, size = 0x4, scoped, tag = 'scoped memory for tpu_custom_call.1']
    #allocation7 [shape = 'u8[512]{0}', space=vmem, size = 0x400, scoped, tag = 'input window, operand 8, single buffered']
    #allocation8 [shape = 'u8[65536]{0}', space=vmem, size = 0x10000, scoped, tag = 'input window, operand 9, single buffered']
    #allocation9 [shape = 's32[1]{0}', space=sflag, size = 0x4, scoped, tag = 'scoped memory for tpu_custom_call.1']
    #allocation10 [shape = 'u8[16384]{0}', space=vmem, size = 0x4000, scoped, tag = 'input window, operand 11, single buffered']
    #allocation11 [shape = 'u8[8192]{0}', space=vmem, size = 0x2000, scoped, tag = 'input window, operand 12, single buffered']
    #allocation12 [shape = 's32[1]{0}', space=sflag, size = 0x4, scoped, tag = 'scoped memory for tpu_custom_call.1']
    #allocation13 [shape = 'u8[8192]{0}', space=vmem, size = 0x2000, scoped, tag = 'input window, operand 13, single buffered']
    #allocation14 [shape = 'u8[16384]{0}', space=vmem, size = 0x4000, scoped, tag = 'output window, operand 0, single buffered']
    #allocation15 [shape = 'u8[8192]{0}', space=vmem, size = 0x2000, scoped, tag = 'output window, operand 1, single buffered']
    #allocation16 [shape = 's32[1]{0}', space=sflag, size = 0x4, scoped, tag = 'scoped memory for tpu_custom_call.1']
    %23 = vsyncpa [#allocation3], 0
    %24 = vsyncpa [#allocation6], 0
    %25 = vsyncpa [#allocation9], 0
    %26 = vsyncpa [#allocation12], 0
    %27 = vsyncpa [#allocation4], 0
    %28 = vsyncpa [#allocation16], 0
    // Predicated region
    $region2: #{tpu_custom_call.1} parent=1 // pred_check
      _
    $region3: #{tpu_custom_call.1} parent=1 // pred_check_branch
      %30 = sbr.rel (0) target = $region5
    $region4: #{tpu_custom_call.1} parent=1 // pred_region
      %s32 = ssub.s32 512, 512
      %33 = vsyncadd [#allocation3], %s32
      %s34 = sshll.u32 [#allocation2], 4
      %s35 = int_to_ptr.vmem [resolvable:$true] %s34
      %40 = dma.hbm_to_vmem [thread:$0]  %s0, 512, %s35, [#allocation3], 128, 128, 8
    $region5: #{tpu_custom_call.1} parent=1 // pred_fallthru
      _
    // Predicated region
    $region6: #{tpu_custom_call.1} parent=1 // pred_check
      _
    $region7: #{tpu_custom_call.1} parent=1 // pred_check_branch
      %42 = sbr.rel (0) target = $region9
    $region8: #{tpu_custom_call.1} parent=1 // pred_region
      %s44 = ssub.s32 3072, 3072
      %45 = vsyncadd [#allocation6], %s44
      %s46 = sshll.u32 [#allocation5], 4
      %s47 = int_to_ptr.vmem [resolvable:$true] %s46
      %52 = dma.hbm_to_vmem [thread:$0]  %s1, 3072, %s47, [#allocation6], 128, 128, 8
    $region9: #{tpu_custom_call.1} parent=1 // pred_fallthru
      _
    // Predicated region
    $region10: #{tpu_custom_call.1} parent=1 // pred_check
      _
    $region11: #{tpu_custom_call.1} parent=1 // pred_check_branch
      %54 = sbr.rel (0) target = $region13
    $region12: #{tpu_custom_call.1} parent=1 // pred_region
      _
    $region13: #{tpu_custom_call.1} parent=1 // pred_fallthru
      _
    // Predicated region
    $region14: #{tpu_custom_call.1} parent=1 // pred_check
      _
    $region15: #{tpu_custom_call.1} parent=1 // pred_check_branch
      %56 = sbr.rel (0) target = $region17
    $region16: #{tpu_custom_call.1} parent=1 // pred_region
      _
    $region17: #{tpu_custom_call.1} parent=1 // pred_fallthru
      _
    // Predicated region
    $region18: #{tpu_custom_call.1} parent=1 // pred_check
      _
    $region19: #{tpu_custom_call.1} parent=1 // pred_check_branch
      %58 = sbr.rel (0) target = $region21
    $region20: #{tpu_custom_call.1} parent=1 // pred_region
      _
    $region21: #{tpu_custom_call.1} parent=1 // pred_fallthru
      _
    // Predicated region
    $region22: #{tpu_custom_call.1} parent=1 // pred_check
      _
    $region23: #{tpu_custom_call.1} parent=1 // pred_check_branch
      %60 = sbr.rel (0) target = $region25
    $region24: #{tpu_custom_call.1} parent=1 // pred_region
      _
    $region25: #{tpu_custom_call.1} parent=1 // pred_fallthru
      _
    // Predicated region
    $region26: #{tpu_custom_call.1} parent=1 // pred_check
      _
    $region27: #{tpu_custom_call.1} parent=1 // pred_check_branch
      %62 = sbr.rel (0) target = $region29
    $region28: #{tpu_custom_call.1} parent=1 // pred_region
      _
    $region29: #{tpu_custom_call.1} parent=1 // pred_fallthru
      _
    // Predicated region
    $region30: #{tpu_custom_call.1} parent=1 // pred_check
      _
    $region31: #{tpu_custom_call.1} parent=1 // pred_check_branch
      %64 = sbr.rel (0) target = $region33
    $region32: #{tpu_custom_call.1} parent=1 // pred_region
      _
    $region33: #{tpu_custom_call.1} parent=1 // pred_fallthru
      _
    // Predicated region
    $region34: #{tpu_custom_call.1} parent=1 // pred_check
      _
    $region35: #{tpu_custom_call.1} parent=1 // pred_check_branch
      %66 = sbr.rel (0) target = $region37
    $region36: #{tpu_custom_call.1} parent=1 // pred_region
      %s68 = ssub.s32 16, 16
      %69 = vsyncadd [#allocation6], %s68
      %s71 = sshll.u32 [#allocation7], 4
      %s72 = int_to_ptr.vmem [resolvable:$true] %s71
      %74 = dma.hbm_to_vmem [thread:$0]  %s8, 16, %s72, [#allocation6]
    $region37: #{tpu_custom_call.1} parent=1 // pred_fallthru
      _
    // Predicated region
    $region38: #{tpu_custom_call.1} parent=1 // pred_check
      _
    $region39: #{tpu_custom_call.1} parent=1 // pred_check_branch
      %76 = sbr.rel (0) target = $region41
    $region40: #{tpu_custom_call.1} parent=1 // pred_region
      %s78 = ssub.s32 2048, 2048
      %79 = vsyncadd [#allocation9], %s78
      %s80 = sshll.u32 [#allocation8], 4
      %s81 = int_to_ptr.vmem [resolvable:$true] %s80
      %86 = dma.hbm_to_vmem [thread:$0]  %s9, 2048, %s81, [#allocation9], 128, 128, 8
    $region41: #{tpu_custom_call.1} parent=1 // pred_fallthru
      _
    // Predicated region
    $region42: #{tpu_custom_call.1} parent=1 // pred_check
      _
    $region43: #{tpu_custom_call.1} parent=1 // pred_check_branch
      %88 = sbr.rel (0) target = $region45
    $region44: #{tpu_custom_call.1} parent=1 // pred_region
      _
    $region45: #{tpu_custom_call.1} parent=1 // pred_fallthru
      _
    // Predicated region
    $region46: #{tpu_custom_call.1} parent=1 // pred_check
      _
    $region47: #{tpu_custom_call.1} parent=1 // pred_check_branch
      %90 = sbr.rel (0) target = $region49
    $region48: #{tpu_custom_call.1} parent=1 // pred_region
      %s92 = ssub.s32 512, 512
      %93 = vsyncadd [#allocation9], %s92
      %s94 = sshll.u32 [#allocation10], 4
      %s95 = int_to_ptr.vmem [resolvable:$true] %s94
      %100 = dma.hbm_to_vmem [thread:$0]  %s11, 512, %s95, [#allocation9], 128, 128, 8
    $region49: #{tpu_custom_call.1} parent=1 // pred_fallthru
      _
    // Predicated region
    $region50: #{tpu_custom_call.1} parent=1 // pred_check
      _
    $region51: #{tpu_custom_call.1} parent=1 // pred_check_branch
      %102 = sbr.rel (0) target = $region53
    $region52: #{tpu_custom_call.1} parent=1 // pred_region
      %s104 = ssub.s32 256, 256
      %105 = vsyncadd [#allocation12], %s104
      %s106 = sshll.u32 [#allocation11], 4
      %s107 = int_to_ptr.vmem [resolvable:$true] %s106
      %112 = dma.hbm_to_vmem [thread:$0]  %s12, 256, %s107, [#allocation12], 128, 128, 8
    $region53: #{tpu_custom_call.1} parent=1 // pred_fallthru
      _
    // Predicated region
    $region54: #{tpu_custom_call.1} parent=1 // pred_check
      _
    $region55: #{tpu_custom_call.1} parent=1 // pred_check_branch
      %114 = sbr.rel (0) target = $region57
    $region56: #{tpu_custom_call.1} parent=1 // pred_region
      %s116 = ssub.s32 256, 256
      %117 = vsyncadd [#allocation12], %s116
      %s118 = sshll.u32 [#allocation13], 4
      %s119 = int_to_ptr.vmem [resolvable:$true] %s118
      %124 = dma.hbm_to_vmem [thread:$0]  %s13, 256, %s119, [#allocation12], 128, 128, 8
    $region57: #{tpu_custom_call.1} parent=1 // pred_fallthru
      _
    // Predicated region
    $region58: #{tpu_custom_call.1} parent=1 // pred_check
      _
    $region59: #{tpu_custom_call.1} parent=1 // pred_check_branch
      %126 = sbr.rel (0) target = $region61
    $region60: #{tpu_custom_call.1} parent=1 // pred_region
      _
    $region61: #{tpu_custom_call.1} parent=1 // pred_fallthru
      _
    // Predicated region
    $region62: #{tpu_custom_call.1} parent=1 // pred_check
      _
    $region63: #{tpu_custom_call.1} parent=1 // pred_check_branch
      %128 = sbr.rel (0) target = $region65
    $region64: #{tpu_custom_call.1} parent=1 // pred_region
      _
    $region65: #{tpu_custom_call.1} parent=1 // pred_fallthru
      _
    // Predicated region
    $region66: #{tpu_custom_call.1} parent=1 // pred_check
      _
    $region67: #{tpu_custom_call.1} parent=1 // pred_check_branch
      %130 = sbr.rel (0) target = $region69
    $region68: #{tpu_custom_call.1} parent=1 // pred_region
      %131 = dma.done [#allocation3], 512
    $region69: #{tpu_custom_call.1} parent=1 // pred_fallthru
      _
    // Predicated region
    $region70: #{tpu_custom_call.1} parent=1 // pred_check
      _
    $region71: #{tpu_custom_call.1} parent=1 // pred_check_branch
      %133 = sbr.rel (0) target = $region73
    $region72: #{tpu_custom_call.1} parent=1 // pred_region
      %134 = dma.done [#allocation6], 3072
    $region73: #{tpu_custom_call.1} parent=1 // pred_fallthru
      _
    // Predicated region
    $region74: #{tpu_custom_call.1} parent=1 // pred_check
      _
    $region75: #{tpu_custom_call.1} parent=1 // pred_check_branch
      %136 = sbr.rel (0) target = $region77
    $region76: #{tpu_custom_call.1} parent=1 // pred_region
      %137 = dma.done [#allocation6], 16
    $region77: #{tpu_custom_call.1} parent=1 // pred_fallthru
      _
    // Predicated region
    $region78: #{tpu_custom_call.1} parent=1 // pred_check
      _
    $region79: #{tpu_custom_call.1} parent=1 // pred_check_branch
      %139 = sbr.rel (0) target = $region81
    $region80: #{tpu_custom_call.1} parent=1 // pred_region
      %140 = dma.done [#allocation9], 2048
    $region81: #{tpu_custom_call.1} parent=1 // pred_fallthru
      _
    // Predicated region
    $region82: #{tpu_custom_call.1} parent=1 // pred_check
      _
    $region83: #{tpu_custom_call.1} parent=1 // pred_check_branch
      %142 = sbr.rel (0) target = $region85
    $region84: #{tpu_custom_call.1} parent=1 // pred_region
      %143 = dma.done [#allocation9], 512
    $region85: #{tpu_custom_call.1} parent=1 // pred_fallthru
      _
    // Predicated region
    $region86: #{tpu_custom_call.1} parent=1 // pred_check
      _
    $region87: #{tpu_custom_call.1} parent=1 // pred_check_branch
      %145 = sbr.rel (0) target = $region89
    $region88: #{tpu_custom_call.1} parent=1 // pred_region
      %146 = dma.done [#allocation12], 256
    $region89: #{tpu_custom_call.1} parent=1 // pred_fallthru
      _
    // Predicated region
    $region90: #{tpu_custom_call.1} parent=1 // pred_check
      _
    $region91: #{tpu_custom_call.1} parent=1 // pred_check_branch
      %148 = sbr.rel (0) target = $region93
    $region92: #{tpu_custom_call.1} parent=1 // pred_region
      %149 = dma.done [#allocation12], 256
    $region93: #{tpu_custom_call.1} parent=1 // pred_fallthru
      _
    %v150 = vld [vmem:[#allocation8] sm:$0xff]
    %v151 = vld [vmem:[#allocation8 + $0x8] sm:$0xff]
    %v152 = vld [vmem:[#allocation8 + $0x10] sm:$0xff]
    %v153 = vld [vmem:[#allocation8 + $0x18] sm:$0xff]
    %v154 = vld [vmem:[#allocation8 + $0x20] sm:$0xff]
    %v155 = vld [vmem:[#allocation8 + $0x28] sm:$0xff]
    %v156 = vld [vmem:[#allocation8 + $0x30] sm:$0xff]
    %v157 = vld [vmem:[#allocation8 + $0x38] sm:$0xff]
    %v158 = vld [vmem:[#allocation8 + $0x40] sm:$0xff]
    %v159 = vld [vmem:[#allocation8 + $0x48] sm:$0xff]
    %v160 = vld [vmem:[#allocation8 + $0x50] sm:$0xff]
    %v161 = vld [vmem:[#allocation8 + $0x58] sm:$0xff]
    %v162 = vld [vmem:[#allocation8 + $0x60] sm:$0xff]
    %v163 = vld [vmem:[#allocation8 + $0x68] sm:$0xff]
    %v164 = vld [vmem:[#allocation8 + $0x70] sm:$0xff]
    %v165 = vld [vmem:[#allocation8 + $0x78] sm:$0xff]
    %v166 = vld [vmem:[%s10] sm:$0xff]
    %v167 = vld [vmem:[%s10 + $0x8] sm:$0xff]
    %v168 = vld [vmem:[%s10 + $0x10] sm:$0xff]
    %v169 = vld [vmem:[%s10 + $0x18] sm:$0xff]
    %v170 = vld [vmem:[#allocation10] sm:$0xff]
    %v171 = vld [vmem:[#allocation10 + $0x8] sm:$0xff]
    %v172 = vld [vmem:[#allocation10 + $0x10] sm:$0xff]
    %v173 = vld [vmem:[#allocation10 + $0x18] sm:$0xff]
    %v174 = vld [vmem:[#allocation2] sm:$0xff]
    %v175 = vld [vmem:[#allocation2 + $0x8] sm:$0xff]
    %v176 = vld [vmem:[#allocation2 + $0x10] sm:$0xff]
    %v177 = vld [vmem:[#allocation2 + $0x18] sm:$0xff]
    %v178 = vld [vmem:[%s2] sm:$0x1]
    %v179 = vld [vmem:[%s3] sm:$0x1]
    %v180 = vld [vmem:[%s4] sm:$0x1]
    %vm181 = vcmask 261120
    %v183 = vsel %vm181, %v166, 0
    %v186 = vsel %vm181, %v167, 0
    %v189 = vsel %vm181, %v168, 0
    %v192 = vsel %vm181, %v169, 0
    %194 = vmatprep.subr.mxu0 0.0
    %195 = vmatpush1.msra.mxu0 %v174
    %196 = vmatprep.subr.mxu0 0.0
    %197 = vmatpush1.msra.mxu0 %v175
    %198 = vmatprep.subr.mxu0 0.0
    %199 = vmatpush1.msra.mxu0 %v176
    %200 = vmatprep.subr.mxu0 0.0
    %201 = vmatpush1.msra.mxu0 %v177
    %202 = vmatprep.subr.mxu0 0.0
    %203 = vmatpush1.msra.mxu0 0.0
    %204 = vmatprep.subr.mxu0 0.0
    %205 = vmatpush1.msra.mxu0 0.0
    %206 = vmatprep.subr.mxu0 0.0
    %207 = vmatpush1.msra.mxu0 0.0
    %208 = vmatprep.subr.mxu0 0.0
    %209 = vmatpush1.msra.mxu0 0.0
    %210 = vmatprep.subr.mxu0 0.0
    %211 = vmatpush1.msra.mxu0 0.0
    %212 = vmatprep.subr.mxu0 0.0
    %213 = vmatpush1.msra.mxu0 0.0
    %214 = vmatprep.subr.mxu0 0.0
    %215 = vmatpush1.msra.mxu0 0.0
    %216 = vmatprep.subr.mxu0 0.0
    %217 = vmatpush1.msra.mxu0 0.0
    %218 = vmatprep.subr.mxu0 0.0
    %219 = vmatpush1.msra.mxu0 0.0
    %220 = vmatprep.subr.mxu0 0.0
    %221 = vmatpush1.msra.mxu0 0.0
    %222 = vmatprep.subr.mxu0 0.0
    %223 = vmatpush1.msra.mxu0 0.0
    %224 = vmatprep.subr.mxu0 0.0
    %225 = vmatpush1.msra.mxu0 0.0
    %226 = vmatprep.subr.mxu0 0.0
    %227 = vmatpush1.msra.mxu0 0.0
    %228 = vmatprep.subr.mxu0 0.0
    %229 = vmatpush1.msra.mxu0 0.0
    %230 = vmatprep.subr.mxu0 0.0
    %231 = vmatpush1.msra.mxu0 0.0
    %232 = vmatprep.subr.mxu0 0.0
    %233 = vmatpush1.msra.mxu0 0.0
    %234 = vmatprep.subr.mxu0 0.0
    %235 = vmatpush1.msra.mxu0 0.0
    %236 = vmatprep.subr.mxu0 0.0
    %237 = vmatpush1.msra.mxu0 0.0
    %238 = vmatprep.subr.mxu0 0.0
    %239 = vmatpush1.msra.mxu0 0.0
    %240 = vmatprep.subr.mxu0 0.0
    %241 = vmatpush1.msra.mxu0 0.0
    %242 = vmatprep.subr.mxu0 0.0
    %243 = vmatpush1.msra.mxu0 0.0
    %244 = vmatprep.subr.mxu0 0.0
    %245 = vmatpush1.msra.mxu0 0.0
    %246 = vmatprep.subr.mxu0 0.0
    %247 = vmatpush1.msra.mxu0 0.0
    %248 = vmatprep.subr.mxu0 0.0
    %249 = vmatpush1.msra.mxu0 0.0
    %250 = vmatprep.subr.mxu0 0.0
    %251 = vmatpush1.msra.mxu0 0.0
    %252 = vmatprep.subr.mxu0 0.0
    %253 = vmatpush1.msra.mxu0 0.0
    %254 = vmatprep.subr.mxu0 0.0
    %255 = vmatpush1.msra.mxu0 0.0
    %256 = vmatprep.subr.mxu0 0.0
    %257 = vmatpush1.msra.mxu0 0.0
    %258 = vmatprep.mubr.f32.mxu0 0.0
    %259 = vmatmul.mubr.f32.gmra.mrb[0].mxu0 %v183
    %v260 = vpop.f32.mrb[0].mxu0
    %v261 = vadd.f32 0.0, %v260
    %v262 = vpop.f32.mrb[0].mxu0
    %263 = vmatprep.mubr.f32.mxu0 0.0
    %264 = vmatmul.mubr.f32.gmra.mrb[0].mxu0 %v186
    %v265 = vpop.f32.mrb[0].mxu0
    %v266 = vadd.f32 0.0, %v265
    %v267 = vpop.f32.mrb[0].mxu0
    %268 = vmatprep.mubr.f32.mxu0 0.0
    %269 = vmatmul.mubr.f32.gmra.mrb[0].mxu0 %v189
    %v270 = vpop.f32.mrb[0].mxu0
    %v271 = vadd.f32 0.0, %v270
    %v272 = vpop.f32.mrb[0].mxu0
    %273 = vmatprep.mubr.f32.mxu0 0.0
    %274 = vmatmul.mubr.f32.gmra.mrb[0].mxu0 %v192
    %v275 = vpop.f32.mrb[0].mxu0
    %v276 = vadd.f32 0.0, %v275
    %v277 = vpop.f32.mrb[0].mxu0
    %278 = vdwg.mxu0
    %v280 = vsel %vm181, %v170, 0
    %v283 = vsel %vm181, %v171, 0
    %v286 = vsel %vm181, %v172, 0
    %v289 = vsel %vm181, %v173, 0
    %291 = vmatprep.subr.mxu0 0.0
    %292 = vmatpush1.msra.mxu0 %v174
    %293 = vmatprep.subr.mxu0 0.0
    %294 = vmatpush1.msra.mxu0 %v175
    %295 = vmatprep.subr.mxu0 0.0
    %296 = vmatpush1.msra.mxu0 %v176
    %297 = vmatprep.subr.mxu0 0.0
    %298 = vmatpush1.msra.mxu0 %v177
    %299 = vmatprep.subr.mxu0 0.0
    %300 = vmatpush1.msra.mxu0 0.0
    %301 = vmatprep.subr.mxu0 0.0
    %302 = vmatpush1.msra.mxu0 0.0
    %303 = vmatprep.subr.mxu0 0.0
    %304 = vmatpush1.msra.mxu0 0.0
    %305 = vmatprep.subr.mxu0 0.0
    %306 = vmatpush1.msra.mxu0 0.0
    %307 = vmatprep.subr.mxu0 0.0
    %308 = vmatpush1.msra.mxu0 0.0
    %309 = vmatprep.subr.mxu0 0.0
    %310 = vmatpush1.msra.mxu0 0.0
    %311 = vmatprep.subr.mxu0 0.0
    %312 = vmatpush1.msra.mxu0 0.0
    %313 = vmatprep.subr.mxu0 0.0
    %314 = vmatpush1.msra.mxu0 0.0
    %315 = vmatprep.subr.mxu0 0.0
    %316 = vmatpush1.msra.mxu0 0.0
    %317 = vmatprep.subr.mxu0 0.0
    %318 = vmatpush1.msra.mxu0 0.0
    %319 = vmatprep.subr.mxu0 0.0
    %320 = vmatpush1.msra.mxu0 0.0
    %321 = vmatprep.subr.mxu0 0.0
    %322 = vmatpush1.msra.mxu0 0.0
    %323 = vmatprep.subr.mxu0 0.0
    %324 = vmatpush1.msra.mxu0 0.0
    %325 = vmatprep.subr.mxu0 0.0
    %326 = vmatpush1.msra.mxu0 0.0
    %327 = vmatprep.subr.mxu0 0.0
    %328 = vmatpush1.msra.mxu0 0.0
    %329 = vmatprep.subr.mxu0 0.0
    %330 = vmatpush1.msra.mxu0 0.0
    %331 = vmatprep.subr.mxu0 0.0
    %332 = vmatpush1.msra.mxu0 0.0
    %333 = vmatprep.subr.mxu0 0.0
    %334 = vmatpush1.msra.mxu0 0.0
    %335 = vmatprep.subr.mxu0 0.0
    %336 = vmatpush1.msra.mxu0 0.0
    %337 = vmatprep.subr.mxu0 0.0
    %338 = vmatpush1.msra.mxu0 0.0
    %339 = vmatprep.subr.mxu0 0.0
    %340 = vmatpush1.msra.mxu0 0.0
    %341 = vmatprep.subr.mxu0 0.0
    %342 = vmatpush1.msra.mxu0 0.0
    %343 = vmatprep.subr.mxu0 0.0
    %344 = vmatpush1.msra.mxu0 0.0
    %345 = vmatprep.subr.mxu0 0.0
    %346 = vmatpush1.msra.mxu0 0.0
    %347 = vmatprep.subr.mxu0 0.0
    %348 = vmatpush1.msra.mxu0 0.0
    %349 = vmatprep.subr.mxu0 0.0
    %350 = vmatpush1.msra.mxu0 0.0
    %351 = vmatprep.subr.mxu0 0.0
    %352 = vmatpush1.msra.mxu0 0.0
    %353 = vmatprep.subr.mxu0 0.0
    %354 = vmatpush1.msra.mxu0 0.0
    %355 = vmatprep.mubr.f32.mxu0 0.0
    %356 = vmatmul.mubr.f32.gmra.mrb[0].mxu0 %v280
    %v357 = vpop.f32.mrb[0].mxu0
    %v358 = vadd.f32 0.0, %v357
    %v359 = vpop.f32.mrb[0].mxu0
    %360 = vmatprep.mubr.f32.mxu0 0.0
    %361 = vmatmul.mubr.f32.gmra.mrb[0].mxu0 %v283
    %v362 = vpop.f32.mrb[0].mxu0
    %v363 = vadd.f32 0.0, %v362
    %v364 = vpop.f32.mrb[0].mxu0
    %365 = vmatprep.mubr.f32.mxu0 0.0
    %366 = vmatmul.mubr.f32.gmra.mrb[0].mxu0 %v286
    %v367 = vpop.f32.mrb[0].mxu0
    %v368 = vadd.f32 0.0, %v367
    %v369 = vpop.f32.mrb[0].mxu0
    %370 = vmatprep.mubr.f32.mxu0 0.0
    %371 = vmatmul.mubr.f32.gmra.mrb[0].mxu0 %v289
    %v372 = vpop.f32.mrb[0].mxu0
    %v373 = vadd.f32 0.0, %v372
    %v374 = vpop.f32.mrb[0].mxu0
    %375 = vdwg.mxu0
    %v376 = vld [vmem:[#allocation5] sm:$0xff]
    %v377 = vld [vmem:[#allocation5 + $0x8] sm:$0xff]
    %v378 = vld [vmem:[#allocation5 + $0x10] sm:$0xff]
    %v379 = vld [vmem:[#allocation5 + $0x18] sm:$0xff]
    %v380 = vld [vmem:[#allocation5 + $0x20] sm:$0xff]
    %v381 = vld [vmem:[#allocation5 + $0x28] sm:$0xff]
    %v382 = vld [vmem:[#allocation5 + $0x30] sm:$0xff]
    %v383 = vld [vmem:[#allocation5 + $0x38] sm:$0xff]
    %s384 = scalar_lea.vmem [#allocation5], 64
    %v385 = vld [vmem:[%s384] sm:$0xff]
    %v386 = vld [vmem:[%s384 + $0x8] sm:$0xff]
    %v387 = vld [vmem:[%s384 + $0x10] sm:$0xff]
    %v388 = vld [vmem:[%s384 + $0x18] sm:$0xff]
    %v389 = vld [vmem:[%s384 + $0x20] sm:$0xff]
    %v390 = vld [vmem:[%s384 + $0x28] sm:$0xff]
    %v391 = vld [vmem:[%s384 + $0x30] sm:$0xff]
    %v392 = vld [vmem:[%s384 + $0x38] sm:$0xff]
    %vm393 = vcmask 523264
    %v395 = vsel %vm393, %v174, 0
    %v398 = vsel %vm393, %v175, 0
    %v401 = vsel %vm393, %v176, 0
    %v404 = vsel %vm393, %v177, 0
    %406 = vmatprep.subr.mxu0 0.0
    %407 = vmatpush1.msra.mxu0 %v385
    %408 = vmatprep.subr.mxu0 0.0
    %409 = vmatpush1.msra.mxu0 %v386
    %410 = vmatprep.subr.mxu0 0.0
    %411 = vmatpush1.msra.mxu0 %v387
    %412 = vmatprep.subr.mxu0 0.0
    %413 = vmatpush1.msra.mxu0 %v388
    %414 = vmatprep.subr.mxu0 0.0
    %415 = vmatpush1.msra.mxu0 %v389
    %416 = vmatprep.subr.mxu0 0.0
    %417 = vmatpush1.msra.mxu0 %v390
    %418 = vmatprep.subr.mxu0 0.0
    %419 = vmatpush1.msra.mxu0 %v391
    %420 = vmatprep.subr.mxu0 0.0
    %421 = vmatpush1.msra.mxu0 %v392
    %422 = vmatprep.subr.mxu0 0.0
    %423 = vmatpush1.msra.mxu0 0.0
    %424 = vmatprep.subr.mxu0 0.0
    %425 = vmatpush1.msra.mxu0 0.0
    %426 = vmatprep.subr.mxu0 0.0
    %427 = vmatpush1.msra.mxu0 0.0
    %428 = vmatprep.subr.mxu0 0.0
    %429 = vmatpush1.msra.mxu0 0.0
    %430 = vmatprep.subr.mxu0 0.0
    %431 = vmatpush1.msra.mxu0 0.0
    %432 = vmatprep.subr.mxu0 0.0
    %433 = vmatpush1.msra.mxu0 0.0
    %434 = vmatprep.subr.mxu0 0.0
    %435 = vmatpush1.msra.mxu0 0.0
    %436 = vmatprep.subr.mxu0 0.0
    %437 = vmatpush1.msra.mxu0 0.0
    %438 = vmatprep.subr.mxu0 0.0
    %439 = vmatpush1.msra.mxu0 0.0
    %440 = vmatprep.subr.mxu0 0.0
    %441 = vmatpush1.msra.mxu0 0.0
    %442 = vmatprep.subr.mxu0 0.0
    %443 = vmatpush1.msra.mxu0 0.0
    %444 = vmatprep.subr.mxu0 0.0
    %445 = vmatpush1.msra.mxu0 0.0
    %446 = vmatprep.subr.mxu0 0.0
    %447 = vmatpush1.msra.mxu0 0.0
    %448 = vmatprep.subr.mxu0 0.0
    %449 = vmatpush1.msra.mxu0 0.0
    %450 = vmatprep.subr.mxu0 0.0
    %451 = vmatpush1.msra.mxu0 0.0
    %452 = vmatprep.subr.mxu0 0.0
    %453 = vmatpush1.msra.mxu0 0.0
    %454 = vmatprep.subr.mxu0 0.0
    %455 = vmatpush1.msra.mxu0 0.0
    %456 = vmatprep.subr.mxu0 0.0
    %457 = vmatpush1.msra.mxu0 0.0
    %458 = vmatprep.subr.mxu0 0.0
    %459 = vmatpush1.msra.mxu0 0.0
    %460 = vmatprep.subr.mxu0 0.0
    %461 = vmatpush1.msra.mxu0 0.0
    %462 = vmatprep.subr.mxu0 0.0
    %463 = vmatpush1.msra.mxu0 0.0
    %464 = vmatprep.subr.mxu0 0.0
    %465 = vmatpush1.msra.mxu0 0.0
    %466 = vmatprep.subr.mxu0 0.0
    %467 = vmatpush1.msra.mxu0 0.0
    %468 = vmatprep.subr.mxu0 0.0
    %469 = vmatpush1.msra.mxu0 0.0
    %470 = vmatprep.mubr.f32.mxu0 0.0
    %471 = vmatmul.mubr.f32.gmra.mrb[0].mxu0 %v395
    %v472 = vpop.f32.mrb[0].mxu0
    %v473 = vadd.f32 0.0, %v472
    %v474 = vpop.f32.mrb[0].mxu0
    %475 = vmatprep.mubr.f32.mxu0 0.0
    %476 = vmatmul.mubr.f32.gmra.mrb[0].mxu0 %v398
    %v477 = vpop.f32.mrb[0].mxu0
    %v478 = vadd.f32 0.0, %v477
    %v479 = vpop.f32.mrb[0].mxu0
    %480 = vmatprep.mubr.f32.mxu0 0.0
    %481 = vmatmul.mubr.f32.gmra.mrb[0].mxu0 %v401
    %v482 = vpop.f32.mrb[0].mxu0
    %v483 = vadd.f32 0.0, %v482
    %v484 = vpop.f32.mrb[0].mxu0
    %485 = vmatprep.mubr.f32.mxu0 0.0
    %486 = vmatmul.mubr.f32.gmra.mrb[0].mxu0 %v404
    %v487 = vpop.f32.mrb[0].mxu0
    %v488 = vadd.f32 0.0, %v487
    %v489 = vpop.f32.mrb[0].mxu0
    %490 = vdwg.mxu0
    %v492 = vsel %vm393, %v261, 0
    %v495 = vsel %vm393, %v266, 0
    %v498 = vsel %vm393, %v271, 0
    %v501 = vsel %vm393, %v276, 0
    %503 = vmatprep.subr.mxu0 0.0
    %504 = vmatpush1.msra.mxu0 %v376
    %505 = vmatprep.subr.mxu0 0.0
    %506 = vmatpush1.msra.mxu0 %v377
    %507 = vmatprep.subr.mxu0 0.0
    %508 = vmatpush1.msra.mxu0 %v378
    %509 = vmatprep.subr.mxu0 0.0
    %510 = vmatpush1.msra.mxu0 %v379
    %511 = vmatprep.subr.mxu0 0.0
    %512 = vmatpush1.msra.mxu0 %v380
    %513 = vmatprep.subr.mxu0 0.0
    %514 = vmatpush1.msra.mxu0 %v381
    %515 = vmatprep.subr.mxu0 0.0
    %516 = vmatpush1.msra.mxu0 %v382
    %517 = vmatprep.subr.mxu0 0.0
    %518 = vmatpush1.msra.mxu0 %v383
    %519 = vmatprep.subr.mxu0 0.0
    %520 = vmatpush1.msra.mxu0 0.0
    %521 = vmatprep.subr.mxu0 0.0
    %522 = vmatpush1.msra.mxu0 0.0
    %523 = vmatprep.subr.mxu0 0.0
    %524 = vmatpush1.msra.mxu0 0.0
    %525 = vmatprep.subr.mxu0 0.0
    %526 = vmatpush1.msra.mxu0 0.0
    %527 = vmatprep.subr.mxu0 0.0
    %528 = vmatpush1.msra.mxu0 0.0
    %529 = vmatprep.subr.mxu0 0.0
    %530 = vmatpush1.msra.mxu0 0.0
    %531 = vmatprep.subr.mxu0 0.0
    %532 = vmatpush1.msra.mxu0 0.0
    %533 = vmatprep.subr.mxu0 0.0
    %534 = vmatpush1.msra.mxu0 0.0
    %535 = vmatprep.subr.mxu0 0.0
    %536 = vmatpush1.msra.mxu0 0.0
    %537 = vmatprep.subr.mxu0 0.0
    %538 = vmatpush1.msra.mxu0 0.0
    %539 = vmatprep.subr.mxu0 0.0
    %540 = vmatpush1.msra.mxu0 0.0
    %541 = vmatprep.subr.mxu0 0.0
    %542 = vmatpush1.msra.mxu0 0.0
    %543 = vmatprep.subr.mxu0 0.0
    %544 = vmatpush1.msra.mxu0 0.0
    %545 = vmatprep.subr.mxu0 0.0
    %546 = vmatpush1.msra.mxu0 0.0
    %547 = vmatprep.subr.mxu0 0.0
    %548 = vmatpush1.msra.mxu0 0.0
    %549 = vmatprep.subr.mxu0 0.0
    %550 = vmatpush1.msra.mxu0 0.0
    %551 = vmatprep.subr.mxu0 0.0
    %552 = vmatpush1.msra.mxu0 0.0
    %553 = vmatprep.subr.mxu0 0.0
    %554 = vmatpush1.msra.mxu0 0.0
    %555 = vmatprep.subr.mxu0 0.0
    %556 = vmatpush1.msra.mxu0 0.0
    %557 = vmatprep.subr.mxu0 0.0
    %558 = vmatpush1.msra.mxu0 0.0
    %559 = vmatprep.subr.mxu0 0.0
    %560 = vmatpush1.msra.mxu0 0.0
    %561 = vmatprep.subr.mxu0 0.0
    %562 = vmatpush1.msra.mxu0 0.0
    %563 = vmatprep.subr.mxu0 0.0
    %564 = vmatpush1.msra.mxu0 0.0
    %565 = vmatprep.subr.mxu0 0.0
    %566 = vmatpush1.msra.mxu0 0.0
    %567 = vmatprep.mubr.f32.mxu0 0.0
    %568 = vmatmul.mubr.f32.gmra.mrb[0].mxu0 %v492
    %v569 = vpop.f32.mrb[0].mxu0
    %v570 = vadd.f32 %v473, %v569
    %v571 = vpop.f32.mrb[0].mxu0
    %572 = vmatprep.mubr.f32.mxu0 0.0
    %573 = vmatmul.mubr.f32.gmra.mrb[0].mxu0 %v495
    %v574 = vpop.f32.mrb[0].mxu0
    %v575 = vadd.f32 %v478, %v574
    %v576 = vpop.f32.mrb[0].mxu0
    %577 = vmatprep.mubr.f32.mxu0 0.0
    %578 = vmatmul.mubr.f32.gmra.mrb[0].mxu0 %v498
    %v579 = vpop.f32.mrb[0].mxu0
    %v580 = vadd.f32 %v483, %v579
    %v581 = vpop.f32.mrb[0].mxu0
    %582 = vmatprep.mubr.f32.mxu0 0.0
    %583 = vmatmul.mubr.f32.gmra.mrb[0].mxu0 %v501
    %v584 = vpop.f32.mrb[0].mxu0
    %v585 = vadd.f32 %v488, %v584
    %v586 = vpop.f32.mrb[0].mxu0
    %587 = vdwg.mxu0
    %s588 = scalar_lea.vmem [#allocation5], 128
    %v589 = vld [vmem:[%s588] sm:$0xff]
    %v590 = vld [vmem:[%s588 + $0x8] sm:$0xff]
    %v591 = vld [vmem:[%s588 + $0x10] sm:$0xff]
    %v592 = vld [vmem:[%s588 + $0x18] sm:$0xff]
    %v593 = vld [vmem:[%s588 + $0x20] sm:$0xff]
    %v594 = vld [vmem:[%s588 + $0x28] sm:$0xff]
    %v595 = vld [vmem:[%s588 + $0x30] sm:$0xff]
    %v596 = vld [vmem:[%s588 + $0x38] sm:$0xff]
    %v598 = vsel %vm393, %v358, 0
    %v601 = vsel %vm393, %v363, 0
    %v604 = vsel %vm393, %v368, 0
    %v607 = vsel %vm393, %v373, 0
    %609 = vmatprep.subr.mxu0 0.0
    %610 = vmatpush1.msra.mxu0 %v589
    %611 = vmatprep.subr.mxu0 0.0
    %612 = vmatpush1.msra.mxu0 %v590
    %613 = vmatprep.subr.mxu0 0.0
    %614 = vmatpush1.msra.mxu0 %v591
    %615 = vmatprep.subr.mxu0 0.0
    %616 = vmatpush1.msra.mxu0 %v592
    %617 = vmatprep.subr.mxu0 0.0
    %618 = vmatpush1.msra.mxu0 %v593
    %619 = vmatprep.subr.mxu0 0.0
    %620 = vmatpush1.msra.mxu0 %v594
    %621 = vmatprep.subr.mxu0 0.0
    %622 = vmatpush1.msra.mxu0 %v595
    %623 = vmatprep.subr.mxu0 0.0
    %624 = vmatpush1.msra.mxu0 %v596
    %625 = vmatprep.subr.mxu0 0.0
    %626 = vmatpush1.msra.mxu0 0.0
    %627 = vmatprep.subr.mxu0 0.0
    %628 = vmatpush1.msra.mxu0 0.0
    %629 = vmatprep.subr.mxu0 0.0
    %630 = vmatpush1.msra.mxu0 0.0
    %631 = vmatprep.subr.mxu0 0.0
    %632 = vmatpush1.msra.mxu0 0.0
    %633 = vmatprep.subr.mxu0 0.0
    %634 = vmatpush1.msra.mxu0 0.0
    %635 = vmatprep.subr.mxu0 0.0
    %636 = vmatpush1.msra.mxu0 0.0
    %637 = vmatprep.subr.mxu0 0.0
    %638 = vmatpush1.msra.mxu0 0.0
    %639 = vmatprep.subr.mxu0 0.0
    %640 = vmatpush1.msra.mxu0 0.0
    %641 = vmatprep.subr.mxu0 0.0
    %642 = vmatpush1.msra.mxu0 0.0
    %643 = vmatprep.subr.mxu0 0.0
    %644 = vmatpush1.msra.mxu0 0.0
    %645 = vmatprep.subr.mxu0 0.0
    %646 = vmatpush1.msra.mxu0 0.0
    %647 = vmatprep.subr.mxu0 0.0
    %648 = vmatpush1.msra.mxu0 0.0
    %649 = vmatprep.subr.mxu0 0.0
    %650 = vmatpush1.msra.mxu0 0.0
    %651 = vmatprep.subr.mxu0 0.0
    %652 = vmatpush1.msra.mxu0 0.0
    %653 = vmatprep.subr.mxu0 0.0
    %654 = vmatpush1.msra.mxu0 0.0
    %655 = vmatprep.subr.mxu0 0.0
    %656 = vmatpush1.msra.mxu0 0.0
    %657 = vmatprep.subr.mxu0 0.0
    %658 = vmatpush1.msra.mxu0 0.0
    %659 = vmatprep.subr.mxu0 0.0
    %660 = vmatpush1.msra.mxu0 0.0
    %661 = vmatprep.subr.mxu0 0.0
    %662 = vmatpush1.msra.mxu0 0.0
    %663 = vmatprep.subr.mxu0 0.0
    %664 = vmatpush1.msra.mxu0 0.0
    %665 = vmatprep.subr.mxu0 0.0
    %666 = vmatpush1.msra.mxu0 0.0
    %667 = vmatprep.subr.mxu0 0.0
    %668 = vmatpush1.msra.mxu0 0.0
    %669 = vmatprep.subr.mxu0 0.0
    %670 = vmatpush1.msra.mxu0 0.0
    %671 = vmatprep.subr.mxu0 0.0
    %672 = vmatpush1.msra.mxu0 0.0
    %673 = vmatprep.mubr.f32.mxu0 0.0
    %674 = vmatmul.mubr.f32.gmra.mrb[0].mxu0 %v598
    %v675 = vpop.f32.mrb[0].mxu0
    %v676 = vadd.f32 0.0, %v675
    %v677 = vpop.f32.mrb[0].mxu0
    %678 = vmatprep.mubr.f32.mxu0 0.0
    %679 = vmatmul.mubr.f32.gmra.mrb[0].mxu0 %v601
    %v680 = vpop.f32.mrb[0].mxu0
    %v681 = vadd.f32 0.0, %v680
    %v682 = vpop.f32.mrb[0].mxu0
    %683 = vmatprep.mubr.f32.mxu0 0.0
    %684 = vmatmul.mubr.f32.gmra.mrb[0].mxu0 %v604
    %v685 = vpop.f32.mrb[0].mxu0
    %v686 = vadd.f32 0.0, %v685
    %v687 = vpop.f32.mrb[0].mxu0
    %688 = vmatprep.mubr.f32.mxu0 0.0
    %689 = vmatmul.mubr.f32.gmra.mrb[0].mxu0 %v607
    %v690 = vpop.f32.mrb[0].mxu0
    %v691 = vadd.f32 0.0, %v690
    %v692 = vpop.f32.mrb[0].mxu0
    %693 = vdwg.mxu0
    %v694 = vadd.f32 %v570, %v676
    %v695 = vadd.f32 %v575, %v681
    %v696 = vadd.f32 %v580, %v686
    %v697 = vadd.f32 %v585, %v691
    %v699 = vlaneseq
    %v700 = vshrl.u32 %v699, 7
    %v701 = vsub.s32 0, %v700
    %v702 = vrot.slane %v178, %v701
    %v704 = vadd.f32 %v694, %v702
    %v705 = vadd.f32 %v695, %v702
    %v706 = vadd.f32 %v696, %v702
    %v707 = vadd.f32 %v697, %v702
    %v708 = vadd.f32 %v704, %v705
    %v709 = vadd.f32 %v708, %v706
    %v710 = vadd.f32 %v709, %v707
    %v711 = vrot.slane %v710, 4
    %v712 = vadd.f32 %v710, %v711
    %v713 = vrot.slane %v712, 2
    %v714 = vadd.f32 %v712, %v713
    %v715 = vrot.slane %v714, 1
    %v716 = vadd.f32 %v714, %v715
    %v717 = vmul.f32 %v704, %v704
    %v718 = vmul.f32 %v705, %v705
    %v719 = vmul.f32 %v706, %v706
    %v720 = vmul.f32 %v707, %v707
    %v721 = vadd.f32 %v717, %v718
    %v722 = vadd.f32 %v721, %v719
    %v723 = vadd.f32 %v722, %v720
    %v724 = vrot.slane %v723, 4
    %v725 = vadd.f32 %v723, %v724
    %v726 = vrot.slane %v725, 2
    %v727 = vadd.f32 %v725, %v726
    %v728 = vrot.slane %v727, 1
    %v729 = vadd.f32 %v727, %v728
    %730 = vmatprep.subr.mxu0 0.0
    %731 = vmatpush1.msra.mxu0 %v150
    %732 = vmatprep.subr.mxu0 0.0
    %733 = vmatpush1.msra.mxu0 %v151
    %734 = vmatprep.subr.mxu0 0.0
    %735 = vmatpush1.msra.mxu0 %v152
    %736 = vmatprep.subr.mxu0 0.0
    %737 = vmatpush1.msra.mxu0 %v153
    %738 = vmatprep.subr.mxu0 0.0
    %739 = vmatpush1.msra.mxu0 %v154
    %740 = vmatprep.subr.mxu0 0.0
    %741 = vmatpush1.msra.mxu0 %v155
    %742 = vmatprep.subr.mxu0 0.0
    %743 = vmatpush1.msra.mxu0 %v156
    %744 = vmatprep.subr.mxu0 0.0
    %745 = vmatpush1.msra.mxu0 %v157
    %746 = vmatprep.subr.mxu0 0.0
    %747 = vmatpush1.msra.mxu0 %v158
    %748 = vmatprep.subr.mxu0 0.0
    %749 = vmatpush1.msra.mxu0 %v159
    %750 = vmatprep.subr.mxu0 0.0
    %751 = vmatpush1.msra.mxu0 %v160
    %752 = vmatprep.subr.mxu0 0.0
    %753 = vmatpush1.msra.mxu0 %v161
    %754 = vmatprep.subr.mxu0 0.0
    %755 = vmatpush1.msra.mxu0 %v162
    %756 = vmatprep.subr.mxu0 0.0
    %757 = vmatpush1.msra.mxu0 %v163
    %758 = vmatprep.subr.mxu0 0.0
    %759 = vmatpush1.msra.mxu0 %v164
    %760 = vmatprep.subr.mxu0 0.0
    %761 = vmatpush1.msra.mxu0 %v165
    %762 = vmatprep.subr.mxu0 0.0
    %763 = vmatpush1.msra.mxu0 0.0
    %764 = vmatprep.subr.mxu0 0.0
    %765 = vmatpush1.msra.mxu0 0.0
    %766 = vmatprep.subr.mxu0 0.0
    %767 = vmatpush1.msra.mxu0 0.0
    %768 = vmatprep.subr.mxu0 0.0
    %769 = vmatpush1.msra.mxu0 0.0
    %770 = vmatprep.subr.mxu0 0.0
    %771 = vmatpush1.msra.mxu0 0.0
    %772 = vmatprep.subr.mxu0 0.0
    %773 = vmatpush1.msra.mxu0 0.0
    %774 = vmatprep.subr.mxu0 0.0
    %775 = vmatpush1.msra.mxu0 0.0
    %776 = vmatprep.subr.mxu0 0.0
    %777 = vmatpush1.msra.mxu0 0.0
    %778 = vmatprep.subr.mxu0 0.0
    %779 = vmatpush1.msra.mxu0 0.0
    %780 = vmatprep.subr.mxu0 0.0
    %781 = vmatpush1.msra.mxu0 0.0
    %782 = vmatprep.subr.mxu0 0.0
    %783 = vmatpush1.msra.mxu0 0.0
    %784 = vmatprep.subr.mxu0 0.0
    %785 = vmatpush1.msra.mxu0 0.0
    %786 = vmatprep.subr.mxu0 0.0
    %787 = vmatpush1.msra.mxu0 0.0
    %788 = vmatprep.subr.mxu0 0.0
    %789 = vmatpush1.msra.mxu0 0.0
    %790 = vmatprep.subr.mxu0 0.0
    %791 = vmatpush1.msra.mxu0 0.0
    %792 = vmatprep.subr.mxu0 0.0
    %793 = vmatpush1.msra.mxu0 0.0
    %794 = vmatprep.mubr.f32.mxu0 0.0
    %795 = vmatmul.mubr.f32.gmra.mrb[0].mxu0 %v716
    %v796 = vpop.f32.mrb[0].mxu0
    %v797 = vadd.f32 0.0, %v796
    %v798 = vpop.f32.mrb[0].mxu0
    %799 = vdwg.mxu0
    %800 = vmatprep.subr.mxu0 0.0
    %801 = vmatpush1.msra.mxu0 %v150
    %802 = vmatprep.subr.mxu0 0.0
    %803 = vmatpush1.msra.mxu0 %v151
    %804 = vmatprep.subr.mxu0 0.0
    %805 = vmatpush1.msra.mxu0 %v152
    %806 = vmatprep.subr.mxu0 0.0
    %807 = vmatpush1.msra.mxu0 %v153
    %808 = vmatprep.subr.mxu0 0.0
    %809 = vmatpush1.msra.mxu0 %v154
    %810 = vmatprep.subr.mxu0 0.0
    %811 = vmatpush1.msra.mxu0 %v155
    %812 = vmatprep.subr.mxu0 0.0
    %813 = vmatpush1.msra.mxu0 %v156
    %814 = vmatprep.subr.mxu0 0.0
    %815 = vmatpush1.msra.mxu0 %v157
    %816 = vmatprep.subr.mxu0 0.0
    %817 = vmatpush1.msra.mxu0 %v158
    %818 = vmatprep.subr.mxu0 0.0
    %819 = vmatpush1.msra.mxu0 %v159
    %820 = vmatprep.subr.mxu0 0.0
    %821 = vmatpush1.msra.mxu0 %v160
    %822 = vmatprep.subr.mxu0 0.0
    %823 = vmatpush1.msra.mxu0 %v161
    %824 = vmatprep.subr.mxu0 0.0
    %825 = vmatpush1.msra.mxu0 %v162
    %826 = vmatprep.subr.mxu0 0.0
    %827 = vmatpush1.msra.mxu0 %v163
    %828 = vmatprep.subr.mxu0 0.0
    %829 = vmatpush1.msra.mxu0 %v164
    %830 = vmatprep.subr.mxu0 0.0
    %831 = vmatpush1.msra.mxu0 %v165
    %832 = vmatprep.subr.mxu0 0.0
    %833 = vmatpush1.msra.mxu0 0.0
    %834 = vmatprep.subr.mxu0 0.0
    %835 = vmatpush1.msra.mxu0 0.0
    %836 = vmatprep.subr.mxu0 0.0
    %837 = vmatpush1.msra.mxu0 0.0
    %838 = vmatprep.subr.mxu0 0.0
    %839 = vmatpush1.msra.mxu0 0.0
    %840 = vmatprep.subr.mxu0 0.0
    %841 = vmatpush1.msra.mxu0 0.0
    %842 = vmatprep.subr.mxu0 0.0
    %843 = vmatpush1.msra.mxu0 0.0
    %844 = vmatprep.subr.mxu0 0.0
    %845 = vmatpush1.msra.mxu0 0.0
    %846 = vmatprep.subr.mxu0 0.0
    %847 = vmatpush1.msra.mxu0 0.0
    %848 = vmatprep.subr.mxu0 0.0
    %849 = vmatpush1.msra.mxu0 0.0
    %850 = vmatprep.subr.mxu0 0.0
    %851 = vmatpush1.msra.mxu0 0.0
    %852 = vmatprep.subr.mxu0 0.0
    %853 = vmatpush1.msra.mxu0 0.0
    %854 = vmatprep.subr.mxu0 0.0
    %855 = vmatpush1.msra.mxu0 0.0
    %856 = vmatprep.subr.mxu0 0.0
    %857 = vmatpush1.msra.mxu0 0.0
    %858 = vmatprep.subr.mxu0 0.0
    %859 = vmatpush1.msra.mxu0 0.0
    %860 = vmatprep.subr.mxu0 0.0
    %861 = vmatpush1.msra.mxu0 0.0
    %862 = vmatprep.subr.mxu0 0.0
    %863 = vmatpush1.msra.mxu0 0.0
    %864 = vmatprep.mubr.f32.mxu0 0.0
    %865 = vmatmul.mubr.f32.gmra.mrb[0].mxu0 %v729
    %v866 = vpop.f32.mrb[0].mxu0
    %v867 = vadd.f32 0.0, %v866
    %v868 = vpop.f32.mrb[0].mxu0
    %869 = vdwg.mxu0
    %v870 = vmul.f32 %v797, %v797
    %v871 = vsub.f32 %v867, %v870
    %v872 = vmax.f32 %v871, 0.0
    %v873 = vadd.f32 %v872, 1e-05
    %v874 = vrsqrt.pop %v873
    %v875 = vmul.f32 %v179, %v874
    %v876 = vmul.f32 %v797, %v875
    %v877 = vsub.f32 %v180, %v876
    %v879 = vlaneseq
    %v880 = vshrl.u32 %v879, 7
    %v881 = vsub.s32 0, %v880
    %v882 = vrot.slane %v875, %v881
    %v884 = vmul.f32 %v704, %v882
    %v885 = vmul.f32 %v705, %v882
    %v886 = vmul.f32 %v706, %v882
    %v887 = vmul.f32 %v707, %v882
    %v889 = vlaneseq
    %v890 = vshrl.u32 %v889, 7
    %v891 = vsub.s32 0, %v890
    %v892 = vrot.slane %v877, %v891
    %v894 = vadd.f32 %v884, %v892
    %v895 = vadd.f32 %v885, %v892
    %v896 = vadd.f32 %v886, %v892
    %v897 = vadd.f32 %v887, %v892
    %vm898 = vcmp.gt.f32.partialorder %v894, 0.0
    %vm899 = vcmp.gt.f32.partialorder %v895, 0.0
    %vm900 = vcmp.gt.f32.partialorder %v896, 0.0
    %vm901 = vcmp.gt.f32.partialorder %v897, 0.0
    %v902 = vmul.f32 %v894, 0.01
    %v903 = vmul.f32 %v895, 0.01
    %v904 = vmul.f32 %v896, 0.01
    %v905 = vmul.f32 %v897, 0.01
    %v906 = vsel %vm898, %v894, %v902
    %v907 = vsel %vm899, %v895, %v903
    %v908 = vsel %vm900, %v896, %v904
    %v909 = vsel %vm901, %v897, %v905
    %v910 = vld [vmem:[%s6] sm:$0x1]
    %v911 = vld [vmem:[%s7] sm:$0x1]
    %v912 = vld [vmem:[#allocation7] sm:$0x1]
    %913 = vmatprep.subr.mxu0 0.0
    %914 = vmatpush1.msra.mxu0 %v906
    %915 = vmatprep.subr.mxu0 0.0
    %916 = vmatpush1.msra.mxu0 %v907
    %917 = vmatprep.subr.mxu0 0.0
    %918 = vmatpush1.msra.mxu0 %v908
    %919 = vmatprep.subr.mxu0 0.0
    %920 = vmatpush1.msra.mxu0 %v909
    %921 = vmatprep.subr.mxu0 0.0
    %922 = vmatpush1.msra.mxu0 0.0
    %923 = vmatprep.subr.mxu0 0.0
    %924 = vmatpush1.msra.mxu0 0.0
    %925 = vmatprep.subr.mxu0 0.0
    %926 = vmatpush1.msra.mxu0 0.0
    %927 = vmatprep.subr.mxu0 0.0
    %928 = vmatpush1.msra.mxu0 0.0
    %929 = vmatprep.subr.mxu0 0.0
    %930 = vmatpush1.msra.mxu0 0.0
    %931 = vmatprep.subr.mxu0 0.0
    %932 = vmatpush1.msra.mxu0 0.0
    %933 = vmatprep.subr.mxu0 0.0
    %934 = vmatpush1.msra.mxu0 0.0
    %935 = vmatprep.subr.mxu0 0.0
    %936 = vmatpush1.msra.mxu0 0.0
    %937 = vmatprep.subr.mxu0 0.0
    %938 = vmatpush1.msra.mxu0 0.0
    %939 = vmatprep.subr.mxu0 0.0
    %940 = vmatpush1.msra.mxu0 0.0
    %941 = vmatprep.subr.mxu0 0.0
    %942 = vmatpush1.msra.mxu0 0.0
    %943 = vmatprep.subr.mxu0 0.0
    %944 = vmatpush1.msra.mxu0 0.0
    %945 = vmatprep.subr.mxu0 0.0
    %946 = vmatpush1.msra.mxu0 0.0
    %947 = vmatprep.subr.mxu0 0.0
    %948 = vmatpush1.msra.mxu0 0.0
    %949 = vmatprep.subr.mxu0 0.0
    %950 = vmatpush1.msra.mxu0 0.0
    %951 = vmatprep.subr.mxu0 0.0
    %952 = vmatpush1.msra.mxu0 0.0
    %953 = vmatprep.subr.mxu0 0.0
    %954 = vmatpush1.msra.mxu0 0.0
    %955 = vmatprep.subr.mxu0 0.0
    %956 = vmatpush1.msra.mxu0 0.0
    %957 = vmatprep.subr.mxu0 0.0
    %958 = vmatpush1.msra.mxu0 0.0
    %959 = vmatprep.subr.mxu0 0.0
    %960 = vmatpush1.msra.mxu0 0.0
    %961 = vmatprep.subr.mxu0 0.0
    %962 = vmatpush1.msra.mxu0 0.0
    %963 = vmatprep.subr.mxu0 0.0
    %964 = vmatpush1.msra.mxu0 0.0
    %965 = vmatprep.subr.mxu0 0.0
    %966 = vmatpush1.msra.mxu0 0.0
    %967 = vmatprep.subr.mxu0 0.0
    %968 = vmatpush1.msra.mxu0 0.0
    %969 = vmatprep.subr.mxu0 0.0
    %970 = vmatpush1.msra.mxu0 0.0
    %971 = vmatprep.subr.mxu0 0.0
    %972 = vmatpush1.msra.mxu0 0.0
    %973 = vmatprep.subr.mxu0 0.0
    %974 = vmatpush1.msra.mxu0 0.0
    %975 = vmatprep.subr.mxu0 0.0
    %976 = vmatpush1.msra.mxu0 0.0
    %977 = vmatprep.mubr.f32.mxu0 0.0
    %978 = vmatmul.mubr.f32.gmra.mrb[0].mxu0 %v183
    %v979 = vpop.f32.mrb[0].mxu0
    %v980 = vadd.f32 0.0, %v979
    %v981 = vpop.f32.mrb[0].mxu0
    %982 = vmatprep.mubr.f32.mxu0 0.0
    %983 = vmatmul.mubr.f32.gmra.mrb[0].mxu0 %v186
    %v984 = vpop.f32.mrb[0].mxu0
    %v985 = vadd.f32 0.0, %v984
    %v986 = vpop.f32.mrb[0].mxu0
    %987 = vmatprep.mubr.f32.mxu0 0.0
    %988 = vmatmul.mubr.f32.gmra.mrb[0].mxu0 %v189
    %v989 = vpop.f32.mrb[0].mxu0
    %v990 = vadd.f32 0.0, %v989
    %v991 = vpop.f32.mrb[0].mxu0
    %992 = vmatprep.mubr.f32.mxu0 0.0
    %993 = vmatmul.mubr.f32.gmra.mrb[0].mxu0 %v192
    %v994 = vpop.f32.mrb[0].mxu0
    %v995 = vadd.f32 0.0, %v994
    %v996 = vpop.f32.mrb[0].mxu0
    %997 = vdwg.mxu0
    %998 = vmatprep.subr.mxu0 0.0
    %999 = vmatpush1.msra.mxu0 %v906
    %1000 = vmatprep.subr.mxu0 0.0
    %1001 = vmatpush1.msra.mxu0 %v907
    %1002 = vmatprep.subr.mxu0 0.0
    %1003 = vmatpush1.msra.mxu0 %v908
    %1004 = vmatprep.subr.mxu0 0.0
    %1005 = vmatpush1.msra.mxu0 %v909
    %1006 = vmatprep.subr.mxu0 0.0
    %1007 = vmatpush1.msra.mxu0 0.0
    %1008 = vmatprep.subr.mxu0 0.0
    %1009 = vmatpush1.msra.mxu0 0.0
    %1010 = vmatprep.subr.mxu0 0.0
    %1011 = vmatpush1.msra.mxu0 0.0
    %1012 = vmatprep.subr.mxu0 0.0
    %1013 = vmatpush1.msra.mxu0 0.0
    %1014 = vmatprep.subr.mxu0 0.0
    %1015 = vmatpush1.msra.mxu0 0.0
    %1016 = vmatprep.subr.mxu0 0.0
    %1017 = vmatpush1.msra.mxu0 0.0
    %1018 = vmatprep.subr.mxu0 0.0
    %1019 = vmatpush1.msra.mxu0 0.0
    %1020 = vmatprep.subr.mxu0 0.0
    %1021 = vmatpush1.msra.mxu0 0.0
    %1022 = vmatprep.subr.mxu0 0.0
    %1023 = vmatpush1.msra.mxu0 0.0
    %1024 = vmatprep.subr.mxu0 0.0
    %1025 = vmatpush1.msra.mxu0 0.0
    %1026 = vmatprep.subr.mxu0 0.0
    %1027 = vmatpush1.msra.mxu0 0.0
    %1028 = vmatprep.subr.mxu0 0.0
    %1029 = vmatpush1.msra.mxu0 0.0
    %1030 = vmatprep.subr.mxu0 0.0
    %1031 = vmatpush1.msra.mxu0 0.0
    %1032 = vmatprep.subr.mxu0 0.0
    %1033 = vmatpush1.msra.mxu0 0.0
    %1034 = vmatprep.subr.mxu0 0.0
    %1035 = vmatpush1.msra.mxu0 0.0
    %1036 = vmatprep.subr.mxu0 0.0
    %1037 = vmatpush1.msra.mxu0 0.0
    %1038 = vmatprep.subr.mxu0 0.0
    %1039 = vmatpush1.msra.mxu0 0.0
    %1040 = vmatprep.subr.mxu0 0.0
    %1041 = vmatpush1.msra.mxu0 0.0
    %1042 = vmatprep.subr.mxu0 0.0
    %1043 = vmatpush1.msra.mxu0 0.0
    %1044 = vmatprep.subr.mxu0 0.0
    %1045 = vmatpush1.msra.mxu0 0.0
    %1046 = vmatprep.subr.mxu0 0.0
    %1047 = vmatpush1.msra.mxu0 0.0
    %1048 = vmatprep.subr.mxu0 0.0
    %1049 = vmatpush1.msra.mxu0 0.0
    %1050 = vmatprep.subr.mxu0 0.0
    %1051 = vmatpush1.msra.mxu0 0.0
    %1052 = vmatprep.subr.mxu0 0.0
    %1053 = vmatpush1.msra.mxu0 0.0
    %1054 = vmatprep.subr.mxu0 0.0
    %1055 = vmatpush1.msra.mxu0 0.0
    %1056 = vmatprep.subr.mxu0 0.0
    %1057 = vmatpush1.msra.mxu0 0.0
    %1058 = vmatprep.subr.mxu0 0.0
    %1059 = vmatpush1.msra.mxu0 0.0
    %1060 = vmatprep.subr.mxu0 0.0
    %1061 = vmatpush1.msra.mxu0 0.0
    %1062 = vmatprep.mubr.f32.mxu0 0.0
    %1063 = vmatmul.mubr.f32.gmra.mrb[0].mxu0 %v280
    %v1064 = vpop.f32.mrb[0].mxu0
    %v1065 = vadd.f32 0.0, %v1064
    %v1066 = vpop.f32.mrb[0].mxu0
    %1067 = vmatprep.mubr.f32.mxu0 0.0
    %1068 = vmatmul.mubr.f32.gmra.mrb[0].mxu0 %v283
    %v1069 = vpop.f32.mrb[0].mxu0
    %v1070 = vadd.f32 0.0, %v1069
    %v1071 = vpop.f32.mrb[0].mxu0
    %1072 = vmatprep.mubr.f32.mxu0 0.0
    %1073 = vmatmul.mubr.f32.gmra.mrb[0].mxu0 %v286
    %v1074 = vpop.f32.mrb[0].mxu0
    %v1075 = vadd.f32 0.0, %v1074
    %v1076 = vpop.f32.mrb[0].mxu0
    %1077 = vmatprep.mubr.f32.mxu0 0.0
    %1078 = vmatmul.mubr.f32.gmra.mrb[0].mxu0 %v289
    %v1079 = vpop.f32.mrb[0].mxu0
    %v1080 = vadd.f32 0.0, %v1079
    %v1081 = vpop.f32.mrb[0].mxu0
    %1082 = vdwg.mxu0
    %v1083 = vld [vmem:[%s5] sm:$0xff]
    %v1084 = vld [vmem:[%s5 + $0x8] sm:$0xff]
    %v1085 = vld [vmem:[%s5 + $0x10] sm:$0xff]
    %v1086 = vld [vmem:[%s5 + $0x18] sm:$0xff]
    %v1087 = vld [vmem:[%s5 + $0x20] sm:$0xff]
    %v1088 = vld [vmem:[%s5 + $0x28] sm:$0xff]
    %v1089 = vld [vmem:[%s5 + $0x30] sm:$0xff]
    %v1090 = vld [vmem:[%s5 + $0x38] sm:$0xff]
    %v1091 = vld [vmem:[%s5 + $0x40] sm:$0xff]
    %v1092 = vld [vmem:[%s5 + $0x48] sm:$0xff]
    %v1093 = vld [vmem:[%s5 + $0x50] sm:$0xff]
    %v1094 = vld [vmem:[%s5 + $0x58] sm:$0xff]
    %v1095 = vld [vmem:[%s5 + $0x60] sm:$0xff]
    %v1096 = vld [vmem:[%s5 + $0x68] sm:$0xff]
    %v1097 = vld [vmem:[%s5 + $0x70] sm:$0xff]
    %v1098 = vld [vmem:[%s5 + $0x78] sm:$0xff]
    %s1099 = scalar_lea.vmem %s5, 128
    %v1100 = vld [vmem:[%s1099] sm:$0xff]
    %v1101 = vld [vmem:[%s1099 + $0x8] sm:$0xff]
    %v1102 = vld [vmem:[%s1099 + $0x10] sm:$0xff]
    %v1103 = vld [vmem:[%s1099 + $0x18] sm:$0xff]
    %v1104 = vld [vmem:[%s1099 + $0x20] sm:$0xff]
    %v1105 = vld [vmem:[%s1099 + $0x28] sm:$0xff]
    %v1106 = vld [vmem:[%s1099 + $0x30] sm:$0xff]
    %v1107 = vld [vmem:[%s1099 + $0x38] sm:$0xff]
    %v1108 = vld [vmem:[%s1099 + $0x40] sm:$0xff]
    %v1109 = vld [vmem:[%s1099 + $0x48] sm:$0xff]
    %v1110 = vld [vmem:[%s1099 + $0x50] sm:$0xff]
    %v1111 = vld [vmem:[%s1099 + $0x58] sm:$0xff]
    %v1112 = vld [vmem:[%s1099 + $0x60] sm:$0xff]
    %v1113 = vld [vmem:[%s1099 + $0x68] sm:$0xff]
    %v1114 = vld [vmem:[%s1099 + $0x70] sm:$0xff]
    %v1115 = vld [vmem:[%s1099 + $0x78] sm:$0xff]
    %1116 = vmatprep.subr.mxu0 0.0
    %1117 = vmatpush1.msra.mxu0 %v1100
    %1118 = vmatprep.subr.mxu0 0.0
    %1119 = vmatpush1.msra.mxu0 %v1101
    %1120 = vmatprep.subr.mxu0 0.0
    %1121 = vmatpush1.msra.mxu0 %v1102
    %1122 = vmatprep.subr.mxu0 0.0
    %1123 = vmatpush1.msra.mxu0 %v1103
    %1124 = vmatprep.subr.mxu0 0.0
    %1125 = vmatpush1.msra.mxu0 %v1104
    %1126 = vmatprep.subr.mxu0 0.0
    %1127 = vmatpush1.msra.mxu0 %v1105
    %1128 = vmatprep.subr.mxu0 0.0
    %1129 = vmatpush1.msra.mxu0 %v1106
    %1130 = vmatprep.subr.mxu0 0.0
    %1131 = vmatpush1.msra.mxu0 %v1107
    %1132 = vmatprep.subr.mxu0 0.0
    %1133 = vmatpush1.msra.mxu0 %v1108
    %1134 = vmatprep.subr.mxu0 0.0
    %1135 = vmatpush1.msra.mxu0 %v1109
    %1136 = vmatprep.subr.mxu0 0.0
    %1137 = vmatpush1.msra.mxu0 %v1110
    %1138 = vmatprep.subr.mxu0 0.0
    %1139 = vmatpush1.msra.mxu0 %v1111
    %1140 = vmatprep.subr.mxu0 0.0
    %1141 = vmatpush1.msra.mxu0 %v1112
    %1142 = vmatprep.subr.mxu0 0.0
    %1143 = vmatpush1.msra.mxu0 %v1113
    %1144 = vmatprep.subr.mxu0 0.0
    %1145 = vmatpush1.msra.mxu0 %v1114
    %1146 = vmatprep.subr.mxu0 0.0
    %1147 = vmatpush1.msra.mxu0 %v1115
    %1148 = vmatprep.subr.mxu0 0.0
    %1149 = vmatpush1.msra.mxu0 0.0
    %1150 = vmatprep.subr.mxu0 0.0
    %1151 = vmatpush1.msra.mxu0 0.0
    %1152 = vmatprep.subr.mxu0 0.0
    %1153 = vmatpush1.msra.mxu0 0.0
    %1154 = vmatprep.subr.mxu0 0.0
    %1155 = vmatpush1.msra.mxu0 0.0
    %1156 = vmatprep.subr.mxu0 0.0
    %1157 = vmatpush1.msra.mxu0 0.0
    %1158 = vmatprep.subr.mxu0 0.0
    %1159 = vmatpush1.msra.mxu0 0.0
    %1160 = vmatprep.subr.mxu0 0.0
    %1161 = vmatpush1.msra.mxu0 0.0
    %1162 = vmatprep.subr.mxu0 0.0
    %1163 = vmatpush1.msra.mxu0 0.0
    %1164 = vmatprep.subr.mxu0 0.0
    %1165 = vmatpush1.msra.mxu0 0.0
    %1166 = vmatprep.subr.mxu0 0.0
    %1167 = vmatpush1.msra.mxu0 0.0
    %1168 = vmatprep.subr.mxu0 0.0
    %1169 = vmatpush1.msra.mxu0 0.0
    %1170 = vmatprep.subr.mxu0 0.0
    %1171 = vmatpush1.msra.mxu0 0.0
    %1172 = vmatprep.subr.mxu0 0.0
    %1173 = vmatpush1.msra.mxu0 0.0
    %1174 = vmatprep.subr.mxu0 0.0
    %1175 = vmatpush1.msra.mxu0 0.0
    %1176 = vmatprep.subr.mxu0 0.0
    %1177 = vmatpush1.msra.mxu0 0.0
    %1178 = vmatprep.subr.mxu0 0.0
    %1179 = vmatpush1.msra.mxu0 0.0
    %1180 = vmatprep.mubr.f32.mxu0 0.0
    %1181 = vmatmul.mubr.f32.gmra.mrb[0].mxu0 %v906
    %v1182 = vpop.f32.mrb[0].mxu0
    %v1183 = vadd.f32 0.0, %v1182
    %v1184 = vpop.f32.mrb[0].mxu0
    %1185 = vmatprep.mubr.f32.mxu0 0.0
    %1186 = vmatmul.mubr.f32.gmra.mrb[0].mxu0 %v907
    %v1187 = vpop.f32.mrb[0].mxu0
    %v1188 = vadd.f32 0.0, %v1187
    %v1189 = vpop.f32.mrb[0].mxu0
    %1190 = vmatprep.mubr.f32.mxu0 0.0
    %1191 = vmatmul.mubr.f32.gmra.mrb[0].mxu0 %v908
    %v1192 = vpop.f32.mrb[0].mxu0
    %v1193 = vadd.f32 0.0, %v1192
    %v1194 = vpop.f32.mrb[0].mxu0
    %1195 = vmatprep.mubr.f32.mxu0 0.0
    %1196 = vmatmul.mubr.f32.gmra.mrb[0].mxu0 %v909
    %v1197 = vpop.f32.mrb[0].mxu0
    %v1198 = vadd.f32 0.0, %v1197
    %v1199 = vpop.f32.mrb[0].mxu0
    %1200 = vdwg.mxu0
    %1201 = vmatprep.subr.mxu0 0.0
    %1202 = vmatpush1.msra.mxu0 %v1083
    %1203 = vmatprep.subr.mxu0 0.0
    %1204 = vmatpush1.msra.mxu0 %v1084
    %1205 = vmatprep.subr.mxu0 0.0
    %1206 = vmatpush1.msra.mxu0 %v1085
    %1207 = vmatprep.subr.mxu0 0.0
    %1208 = vmatpush1.msra.mxu0 %v1086
    %1209 = vmatprep.subr.mxu0 0.0
    %1210 = vmatpush1.msra.mxu0 %v1087
    %1211 = vmatprep.subr.mxu0 0.0
    %1212 = vmatpush1.msra.mxu0 %v1088
    %1213 = vmatprep.subr.mxu0 0.0
    %1214 = vmatpush1.msra.mxu0 %v1089
    %1215 = vmatprep.subr.mxu0 0.0
    %1216 = vmatpush1.msra.mxu0 %v1090
    %1217 = vmatprep.subr.mxu0 0.0
    %1218 = vmatpush1.msra.mxu0 %v1091
    %1219 = vmatprep.subr.mxu0 0.0
    %1220 = vmatpush1.msra.mxu0 %v1092
    %1221 = vmatprep.subr.mxu0 0.0
    %1222 = vmatpush1.msra.mxu0 %v1093
    %1223 = vmatprep.subr.mxu0 0.0
    %1224 = vmatpush1.msra.mxu0 %v1094
    %1225 = vmatprep.subr.mxu0 0.0
    %1226 = vmatpush1.msra.mxu0 %v1095
    %1227 = vmatprep.subr.mxu0 0.0
    %1228 = vmatpush1.msra.mxu0 %v1096
    %1229 = vmatprep.subr.mxu0 0.0
    %1230 = vmatpush1.msra.mxu0 %v1097
    %1231 = vmatprep.subr.mxu0 0.0
    %1232 = vmatpush1.msra.mxu0 %v1098
    %1233 = vmatprep.subr.mxu0 0.0
    %1234 = vmatpush1.msra.mxu0 0.0
    %1235 = vmatprep.subr.mxu0 0.0
    %1236 = vmatpush1.msra.mxu0 0.0
    %1237 = vmatprep.subr.mxu0 0.0
    %1238 = vmatpush1.msra.mxu0 0.0
    %1239 = vmatprep.subr.mxu0 0.0
    %1240 = vmatpush1.msra.mxu0 0.0
    %1241 = vmatprep.subr.mxu0 0.0
    %1242 = vmatpush1.msra.mxu0 0.0
    %1243 = vmatprep.subr.mxu0 0.0
    %1244 = vmatpush1.msra.mxu0 0.0
    %1245 = vmatprep.subr.mxu0 0.0
    %1246 = vmatpush1.msra.mxu0 0.0
    %1247 = vmatprep.subr.mxu0 0.0
    %1248 = vmatpush1.msra.mxu0 0.0
    %1249 = vmatprep.subr.mxu0 0.0
    %1250 = vmatpush1.msra.mxu0 0.0
    %1251 = vmatprep.subr.mxu0 0.0
    %1252 = vmatpush1.msra.mxu0 0.0
    %1253 = vmatprep.subr.mxu0 0.0
    %1254 = vmatpush1.msra.mxu0 0.0
    %1255 = vmatprep.subr.mxu0 0.0
    %1256 = vmatpush1.msra.mxu0 0.0
    %1257 = vmatprep.subr.mxu0 0.0
    %1258 = vmatpush1.msra.mxu0 0.0
    %1259 = vmatprep.subr.mxu0 0.0
    %1260 = vmatpush1.msra.mxu0 0.0
    %1261 = vmatprep.subr.mxu0 0.0
    %1262 = vmatpush1.msra.mxu0 0.0
    %1263 = vmatprep.subr.mxu0 0.0
    %1264 = vmatpush1.msra.mxu0 0.0
    %1265 = vmatprep.mubr.f32.mxu0 0.0
    %1266 = vmatmul.mubr.f32.gmra.mrb[0].mxu0 %v980
    %v1267 = vpop.f32.mrb[0].mxu0
    %v1268 = vadd.f32 %v1183, %v1267
    %v1269 = vpop.f32.mrb[0].mxu0
    %1270 = vmatprep.mubr.f32.mxu0 0.0
    %1271 = vmatmul.mubr.f32.gmra.mrb[0].mxu0 %v985
    %v1272 = vpop.f32.mrb[0].mxu0
    %v1273 = vadd.f32 %v1188, %v1272
    %v1274 = vpop.f32.mrb[0].mxu0
    %1275 = vmatprep.mubr.f32.mxu0 0.0
    %1276 = vmatmul.mubr.f32.gmra.mrb[0].mxu0 %v990
    %v1277 = vpop.f32.mrb[0].mxu0
    %v1278 = vadd.f32 %v1193, %v1277
    %v1279 = vpop.f32.mrb[0].mxu0
    %1280 = vmatprep.mubr.f32.mxu0 0.0
    %1281 = vmatmul.mubr.f32.gmra.mrb[0].mxu0 %v995
    %v1282 = vpop.f32.mrb[0].mxu0
    %v1283 = vadd.f32 %v1198, %v1282
    %v1284 = vpop.f32.mrb[0].mxu0
    %1285 = vdwg.mxu0
    %s1286 = scalar_lea.vmem %s5, 256
    %v1287 = vld [vmem:[%s1286] sm:$0xff]
    %v1288 = vld [vmem:[%s1286 + $0x8] sm:$0xff]
    %v1289 = vld [vmem:[%s1286 + $0x10] sm:$0xff]
    %v1290 = vld [vmem:[%s1286 + $0x18] sm:$0xff]
    %v1291 = vld [vmem:[%s1286 + $0x20] sm:$0xff]
    %v1292 = vld [vmem:[%s1286 + $0x28] sm:$0xff]
    %v1293 = vld [vmem:[%s1286 + $0x30] sm:$0xff]
    %v1294 = vld [vmem:[%s1286 + $0x38] sm:$0xff]
    %v1295 = vld [vmem:[%s1286 + $0x40] sm:$0xff]
    %v1296 = vld [vmem:[%s1286 + $0x48] sm:$0xff]
    %v1297 = vld [vmem:[%s1286 + $0x50] sm:$0xff]
    %v1298 = vld [vmem:[%s1286 + $0x58] sm:$0xff]
    %v1299 = vld [vmem:[%s1286 + $0x60] sm:$0xff]
    %v1300 = vld [vmem:[%s1286 + $0x68] sm:$0xff]
    %v1301 = vld [vmem:[%s1286 + $0x70] sm:$0xff]
    %v1302 = vld [vmem:[%s1286 + $0x78] sm:$0xff]
    %1303 = vmatprep.subr.mxu0 0.0
    %1304 = vmatpush1.msra.mxu0 %v1287
    %1305 = vmatprep.subr.mxu0 0.0
    %1306 = vmatpush1.msra.mxu0 %v1288
    %1307 = vmatprep.subr.mxu0 0.0
    %1308 = vmatpush1.msra.mxu0 %v1289
    %1309 = vmatprep.subr.mxu0 0.0
    %1310 = vmatpush1.msra.mxu0 %v1290
    %1311 = vmatprep.subr.mxu0 0.0
    %1312 = vmatpush1.msra.mxu0 %v1291
    %1313 = vmatprep.subr.mxu0 0.0
    %1314 = vmatpush1.msra.mxu0 %v1292
    %1315 = vmatprep.subr.mxu0 0.0
    %1316 = vmatpush1.msra.mxu0 %v1293
    %1317 = vmatprep.subr.mxu0 0.0
    %1318 = vmatpush1.msra.mxu0 %v1294
    %1319 = vmatprep.subr.mxu0 0.0
    %1320 = vmatpush1.msra.mxu0 %v1295
    %1321 = vmatprep.subr.mxu0 0.0
    %1322 = vmatpush1.msra.mxu0 %v1296
    %1323 = vmatprep.subr.mxu0 0.0
    %1324 = vmatpush1.msra.mxu0 %v1297
    %1325 = vmatprep.subr.mxu0 0.0
    %1326 = vmatpush1.msra.mxu0 %v1298
    %1327 = vmatprep.subr.mxu0 0.0
    %1328 = vmatpush1.msra.mxu0 %v1299
    %1329 = vmatprep.subr.mxu0 0.0
    %1330 = vmatpush1.msra.mxu0 %v1300
    %1331 = vmatprep.subr.mxu0 0.0
    %1332 = vmatpush1.msra.mxu0 %v1301
    %1333 = vmatprep.subr.mxu0 0.0
    %1334 = vmatpush1.msra.mxu0 %v1302
    %1335 = vmatprep.subr.mxu0 0.0
    %1336 = vmatpush1.msra.mxu0 0.0
    %1337 = vmatprep.subr.mxu0 0.0
    %1338 = vmatpush1.msra.mxu0 0.0
    %1339 = vmatprep.subr.mxu0 0.0
    %1340 = vmatpush1.msra.mxu0 0.0
    %1341 = vmatprep.subr.mxu0 0.0
    %1342 = vmatpush1.msra.mxu0 0.0
    %1343 = vmatprep.subr.mxu0 0.0
    %1344 = vmatpush1.msra.mxu0 0.0
    %1345 = vmatprep.subr.mxu0 0.0
    %1346 = vmatpush1.msra.mxu0 0.0
    %1347 = vmatprep.subr.mxu0 0.0
    %1348 = vmatpush1.msra.mxu0 0.0
    %1349 = vmatprep.subr.mxu0 0.0
    %1350 = vmatpush1.msra.mxu0 0.0
    %1351 = vmatprep.subr.mxu0 0.0
    %1352 = vmatpush1.msra.mxu0 0.0
    %1353 = vmatprep.subr.mxu0 0.0
    %1354 = vmatpush1.msra.mxu0 0.0
    %1355 = vmatprep.subr.mxu0 0.0
    %1356 = vmatpush1.msra.mxu0 0.0
    %1357 = vmatprep.subr.mxu0 0.0
    %1358 = vmatpush1.msra.mxu0 0.0
    %1359 = vmatprep.subr.mxu0 0.0
    %1360 = vmatpush1.msra.mxu0 0.0
    %1361 = vmatprep.subr.mxu0 0.0
    %1362 = vmatpush1.msra.mxu0 0.0
    %1363 = vmatprep.subr.mxu0 0.0
    %1364 = vmatpush1.msra.mxu0 0.0
    %1365 = vmatprep.subr.mxu0 0.0
    %1366 = vmatpush1.msra.mxu0 0.0
    %1367 = vmatprep.mubr.f32.mxu0 0.0
    %1368 = vmatmul.mubr.f32.gmra.mrb[0].mxu0 %v1065
    %v1369 = vpop.f32.mrb[0].mxu0
    %v1370 = vadd.f32 0.0, %v1369
    %v1371 = vpop.f32.mrb[0].mxu0
    %1372 = vmatprep.mubr.f32.mxu0 0.0
    %1373 = vmatmul.mubr.f32.gmra.mrb[0].mxu0 %v1070
    %v1374 = vpop.f32.mrb[0].mxu0
    %v1375 = vadd.f32 0.0, %v1374
    %v1376 = vpop.f32.mrb[0].mxu0
    %1377 = vmatprep.mubr.f32.mxu0 0.0
    %1378 = vmatmul.mubr.f32.gmra.mrb[0].mxu0 %v1075
    %v1379 = vpop.f32.mrb[0].mxu0
    %v1380 = vadd.f32 0.0, %v1379
    %v1381 = vpop.f32.mrb[0].mxu0
    %1382 = vmatprep.mubr.f32.mxu0 0.0
    %1383 = vmatmul.mubr.f32.gmra.mrb[0].mxu0 %v1080
    %v1384 = vpop.f32.mrb[0].mxu0
    %v1385 = vadd.f32 0.0, %v1384
    %v1386 = vpop.f32.mrb[0].mxu0
    %1387 = vdwg.mxu0
    %v1388 = vadd.f32 %v1268, %v1370
    %v1389 = vadd.f32 %v1273, %v1375
    %v1390 = vadd.f32 %v1278, %v1380
    %v1391 = vadd.f32 %v1283, %v1385
    %v1393 = vlaneseq
    %v1394 = vshrl.u32 %v1393, 7
    %v1395 = vsub.s32 0, %v1394
    %v1396 = vrot.slane %v910, %v1395
    %v1398 = vadd.f32 %v1388, %v1396
    %v1399 = vadd.f32 %v1389, %v1396
    %v1400 = vadd.f32 %v1390, %v1396
    %v1401 = vadd.f32 %v1391, %v1396
    %v1402 = vadd.f32 %v1398, %v1399
    %v1403 = vadd.f32 %v1402, %v1400
    %v1404 = vadd.f32 %v1403, %v1401
    %v1405 = vrot.slane %v1404, 4
    %v1406 = vadd.f32 %v1404, %v1405
    %v1407 = vrot.slane %v1406, 2
    %v1408 = vadd.f32 %v1406, %v1407
    %v1409 = vrot.slane %v1408, 1
    %v1410 = vadd.f32 %v1408, %v1409
    %v1411 = vmul.f32 %v1398, %v1398
    %v1412 = vmul.f32 %v1399, %v1399
    %v1413 = vmul.f32 %v1400, %v1400
    %v1414 = vmul.f32 %v1401, %v1401
    %v1415 = vadd.f32 %v1411, %v1412
    %v1416 = vadd.f32 %v1415, %v1413
    %v1417 = vadd.f32 %v1416, %v1414
    %v1418 = vrot.slane %v1417, 4
    %v1419 = vadd.f32 %v1417, %v1418
    %v1420 = vrot.slane %v1419, 2
    %v1421 = vadd.f32 %v1419, %v1420
    %v1422 = vrot.slane %v1421, 1
    %v1423 = vadd.f32 %v1421, %v1422
    %1424 = vmatprep.subr.mxu0 0.0
    %1425 = vmatpush1.msra.mxu0 %v150
    %1426 = vmatprep.subr.mxu0 0.0
    %1427 = vmatpush1.msra.mxu0 %v151
    %1428 = vmatprep.subr.mxu0 0.0
    %1429 = vmatpush1.msra.mxu0 %v152
    %1430 = vmatprep.subr.mxu0 0.0
    %1431 = vmatpush1.msra.mxu0 %v153
    %1432 = vmatprep.subr.mxu0 0.0
    %1433 = vmatpush1.msra.mxu0 %v154
    %1434 = vmatprep.subr.mxu0 0.0
    %1435 = vmatpush1.msra.mxu0 %v155
    %1436 = vmatprep.subr.mxu0 0.0
    %1437 = vmatpush1.msra.mxu0 %v156
    %1438 = vmatprep.subr.mxu0 0.0
    %1439 = vmatpush1.msra.mxu0 %v157
    %1440 = vmatprep.subr.mxu0 0.0
    %1441 = vmatpush1.msra.mxu0 %v158
    %1442 = vmatprep.subr.mxu0 0.0
    %1443 = vmatpush1.msra.mxu0 %v159
    %1444 = vmatprep.subr.mxu0 0.0
    %1445 = vmatpush1.msra.mxu0 %v160
    %1446 = vmatprep.subr.mxu0 0.0
    %1447 = vmatpush1.msra.mxu0 %v161
    %1448 = vmatprep.subr.mxu0 0.0
    %1449 = vmatpush1.msra.mxu0 %v162
    %1450 = vmatprep.subr.mxu0 0.0
    %1451 = vmatpush1.msra.mxu0 %v163
    %1452 = vmatprep.subr.mxu0 0.0
    %1453 = vmatpush1.msra.mxu0 %v164
    %1454 = vmatprep.subr.mxu0 0.0
    %1455 = vmatpush1.msra.mxu0 %v165
    %1456 = vmatprep.subr.mxu0 0.0
    %1457 = vmatpush1.msra.mxu0 0.0
    %1458 = vmatprep.subr.mxu0 0.0
    %1459 = vmatpush1.msra.mxu0 0.0
    %1460 = vmatprep.subr.mxu0 0.0
    %1461 = vmatpush1.msra.mxu0 0.0
    %1462 = vmatprep.subr.mxu0 0.0
    %1463 = vmatpush1.msra.mxu0 0.0
    %1464 = vmatprep.subr.mxu0 0.0
    %1465 = vmatpush1.msra.mxu0 0.0
    %1466 = vmatprep.subr.mxu0 0.0
    %1467 = vmatpush1.msra.mxu0 0.0
    %1468 = vmatprep.subr.mxu0 0.0
    %1469 = vmatpush1.msra.mxu0 0.0
    %1470 = vmatprep.subr.mxu0 0.0
    %1471 = vmatpush1.msra.mxu0 0.0
    %1472 = vmatprep.subr.mxu0 0.0
    %1473 = vmatpush1.msra.mxu0 0.0
    %1474 = vmatprep.subr.mxu0 0.0
    %1475 = vmatpush1.msra.mxu0 0.0
    %1476 = vmatprep.subr.mxu0 0.0
    %1477 = vmatpush1.msra.mxu0 0.0
    %1478 = vmatprep.subr.mxu0 0.0
    %1479 = vmatpush1.msra.mxu0 0.0
    %1480 = vmatprep.subr.mxu0 0.0
    %1481 = vmatpush1.msra.mxu0 0.0
    %1482 = vmatprep.subr.mxu0 0.0
    %1483 = vmatpush1.msra.mxu0 0.0
    %1484 = vmatprep.subr.mxu0 0.0
    %1485 = vmatpush1.msra.mxu0 0.0
    %1486 = vmatprep.subr.mxu0 0.0
    %1487 = vmatpush1.msra.mxu0 0.0
    %1488 = vmatprep.mubr.f32.mxu0 0.0
    %1489 = vmatmul.mubr.f32.gmra.mrb[0].mxu0 %v1410
    %v1490 = vpop.f32.mrb[0].mxu0
    %v1491 = vadd.f32 0.0, %v1490
    %v1492 = vpop.f32.mrb[0].mxu0
    %1493 = vdwg.mxu0
    %1494 = vmatprep.subr.mxu0 0.0
    %1495 = vmatpush1.msra.mxu0 %v150
    %1496 = vmatprep.subr.mxu0 0.0
    %1497 = vmatpush1.msra.mxu0 %v151
    %1498 = vmatprep.subr.mxu0 0.0
    %1499 = vmatpush1.msra.mxu0 %v152
    %1500 = vmatprep.subr.mxu0 0.0
    %1501 = vmatpush1.msra.mxu0 %v153
    %1502 = vmatprep.subr.mxu0 0.0
    %1503 = vmatpush1.msra.mxu0 %v154
    %1504 = vmatprep.subr.mxu0 0.0
    %1505 = vmatpush1.msra.mxu0 %v155
    %1506 = vmatprep.subr.mxu0 0.0
    %1507 = vmatpush1.msra.mxu0 %v156
    %1508 = vmatprep.subr.mxu0 0.0
    %1509 = vmatpush1.msra.mxu0 %v157
    %1510 = vmatprep.subr.mxu0 0.0
    %1511 = vmatpush1.msra.mxu0 %v158
    %1512 = vmatprep.subr.mxu0 0.0
    %1513 = vmatpush1.msra.mxu0 %v159
    %1514 = vmatprep.subr.mxu0 0.0
    %1515 = vmatpush1.msra.mxu0 %v160
    %1516 = vmatprep.subr.mxu0 0.0
    %1517 = vmatpush1.msra.mxu0 %v161
    %1518 = vmatprep.subr.mxu0 0.0
    %1519 = vmatpush1.msra.mxu0 %v162
    %1520 = vmatprep.subr.mxu0 0.0
    %1521 = vmatpush1.msra.mxu0 %v163
    %1522 = vmatprep.subr.mxu0 0.0
    %1523 = vmatpush1.msra.mxu0 %v164
    %1524 = vmatprep.subr.mxu0 0.0
    %1525 = vmatpush1.msra.mxu0 %v165
    %1526 = vmatprep.subr.mxu0 0.0
    %1527 = vmatpush1.msra.mxu0 0.0
    %1528 = vmatprep.subr.mxu0 0.0
    %1529 = vmatpush1.msra.mxu0 0.0
    %1530 = vmatprep.subr.mxu0 0.0
    %1531 = vmatpush1.msra.mxu0 0.0
    %1532 = vmatprep.subr.mxu0 0.0
    %1533 = vmatpush1.msra.mxu0 0.0
    %1534 = vmatprep.subr.mxu0 0.0
    %1535 = vmatpush1.msra.mxu0 0.0
    %1536 = vmatprep.subr.mxu0 0.0
    %1537 = vmatpush1.msra.mxu0 0.0
    %1538 = vmatprep.subr.mxu0 0.0
    %1539 = vmatpush1.msra.mxu0 0.0
    %1540 = vmatprep.subr.mxu0 0.0
    %1541 = vmatpush1.msra.mxu0 0.0
    %1542 = vmatprep.subr.mxu0 0.0
    %1543 = vmatpush1.msra.mxu0 0.0
    %1544 = vmatprep.subr.mxu0 0.0
    %1545 = vmatpush1.msra.mxu0 0.0
    %1546 = vmatprep.subr.mxu0 0.0
    %1547 = vmatpush1.msra.mxu0 0.0
    %1548 = vmatprep.subr.mxu0 0.0
    %1549 = vmatpush1.msra.mxu0 0.0
    %1550 = vmatprep.subr.mxu0 0.0
    %1551 = vmatpush1.msra.mxu0 0.0
    %1552 = vmatprep.subr.mxu0 0.0
    %1553 = vmatpush1.msra.mxu0 0.0
    %1554 = vmatprep.subr.mxu0 0.0
    %1555 = vmatpush1.msra.mxu0 0.0
    %1556 = vmatprep.subr.mxu0 0.0
    %1557 = vmatpush1.msra.mxu0 0.0
    %1558 = vmatprep.mubr.f32.mxu0 0.0
    %1559 = vmatmul.mubr.f32.gmra.mrb[0].mxu0 %v1423
    %v1560 = vpop.f32.mrb[0].mxu0
    %v1561 = vadd.f32 0.0, %v1560
    %v1562 = vpop.f32.mrb[0].mxu0
    %1563 = vdwg.mxu0
    %v1564 = vmul.f32 %v1491, %v1491
    %v1565 = vsub.f32 %v1561, %v1564
    %v1566 = vmax.f32 %v1565, 0.0
    %v1567 = vadd.f32 %v1566, 1e-05
    %v1568 = vrsqrt.pop %v1567
    %v1569 = vmul.f32 %v911, %v1568
    %v1570 = vmul.f32 %v1491, %v1569
    %v1571 = vsub.f32 %v912, %v1570
    %v1573 = vlaneseq
    %v1574 = vshrl.u32 %v1573, 7
    %v1575 = vsub.s32 0, %v1574
    %v1576 = vrot.slane %v1569, %v1575
    %v1578 = vmul.f32 %v1398, %v1576
    %v1579 = vmul.f32 %v1399, %v1576
    %v1580 = vmul.f32 %v1400, %v1576
    %v1581 = vmul.f32 %v1401, %v1576
    %v1583 = vlaneseq
    %v1584 = vshrl.u32 %v1583, 7
    %v1585 = vsub.s32 0, %v1584
    %v1586 = vrot.slane %v1571, %v1585
    %v1588 = vadd.f32 %v1578, %v1586
    %v1589 = vadd.f32 %v1579, %v1586
    %v1590 = vadd.f32 %v1580, %v1586
    %v1591 = vadd.f32 %v1581, %v1586
    %vm1592 = vcmp.gt.f32.partialorder %v1588, 0.0
    %vm1593 = vcmp.gt.f32.partialorder %v1589, 0.0
    %vm1594 = vcmp.gt.f32.partialorder %v1590, 0.0
    %vm1595 = vcmp.gt.f32.partialorder %v1591, 0.0
    %v1596 = vmul.f32 %v1588, 0.01
    %v1597 = vmul.f32 %v1589, 0.01
    %v1598 = vmul.f32 %v1590, 0.01
    %v1599 = vmul.f32 %v1591, 0.01
    %v1600 = vsel %vm1592, %v1588, %v1596
    %v1601 = vsel %vm1593, %v1589, %v1597
    %v1602 = vsel %vm1594, %v1590, %v1598
    %v1603 = vsel %vm1595, %v1591, %v1599
    %1604 = vst [vmem:[#allocation14] sm:$0xff] %v1600
    %1605 = vst [vmem:[#allocation14 + $0x8] sm:$0xff] %v1601
    %1606 = vst [vmem:[#allocation14 + $0x10] sm:$0xff] %v1602
    %1607 = vst [vmem:[#allocation14 + $0x18] sm:$0xff] %v1603
    %v1608 = vld [vmem:[#allocation11] sm:$0xff]
    %v1609 = vld [vmem:[#allocation11 + $0x8] sm:$0xff]
    %v1611 = vsel %vm181, %v1608, 0
    %v1614 = vsel %vm181, %v1609, 0
    %1616 = vmatprep.subr.mxu0 0.0
    %1617 = vmatpush1.msra.mxu0 %v1600
    %1618 = vmatprep.subr.mxu0 0.0
    %1619 = vmatpush1.msra.mxu0 %v1601
    %1620 = vmatprep.subr.mxu0 0.0
    %1621 = vmatpush1.msra.mxu0 %v1602
    %1622 = vmatprep.subr.mxu0 0.0
    %1623 = vmatpush1.msra.mxu0 %v1603
    %1624 = vmatprep.subr.mxu0 0.0
    %1625 = vmatpush1.msra.mxu0 0.0
    %1626 = vmatprep.subr.mxu0 0.0
    %1627 = vmatpush1.msra.mxu0 0.0
    %1628 = vmatprep.subr.mxu0 0.0
    %1629 = vmatpush1.msra.mxu0 0.0
    %1630 = vmatprep.subr.mxu0 0.0
    %1631 = vmatpush1.msra.mxu0 0.0
    %1632 = vmatprep.subr.mxu0 0.0
    %1633 = vmatpush1.msra.mxu0 0.0
    %1634 = vmatprep.subr.mxu0 0.0
    %1635 = vmatpush1.msra.mxu0 0.0
    %1636 = vmatprep.subr.mxu0 0.0
    %1637 = vmatpush1.msra.mxu0 0.0
    %1638 = vmatprep.subr.mxu0 0.0
    %1639 = vmatpush1.msra.mxu0 0.0
    %1640 = vmatprep.subr.mxu0 0.0
    %1641 = vmatpush1.msra.mxu0 0.0
    %1642 = vmatprep.subr.mxu0 0.0
    %1643 = vmatpush1.msra.mxu0 0.0
    %1644 = vmatprep.subr.mxu0 0.0
    %1645 = vmatpush1.msra.mxu0 0.0
    %1646 = vmatprep.subr.mxu0 0.0
    %1647 = vmatpush1.msra.mxu0 0.0
    %1648 = vmatprep.subr.mxu0 0.0
    %1649 = vmatpush1.msra.mxu0 0.0
    %1650 = vmatprep.subr.mxu0 0.0
    %1651 = vmatpush1.msra.mxu0 0.0
    %1652 = vmatprep.subr.mxu0 0.0
    %1653 = vmatpush1.msra.mxu0 0.0
    %1654 = vmatprep.subr.mxu0 0.0
    %1655 = vmatpush1.msra.mxu0 0.0
    %1656 = vmatprep.subr.mxu0 0.0
    %1657 = vmatpush1.msra.mxu0 0.0
    %1658 = vmatprep.subr.mxu0 0.0
    %1659 = vmatpush1.msra.mxu0 0.0
    %1660 = vmatprep.subr.mxu0 0.0
    %1661 = vmatpush1.msra.mxu0 0.0
    %1662 = vmatprep.subr.mxu0 0.0
    %1663 = vmatpush1.msra.mxu0 0.0
    %1664 = vmatprep.subr.mxu0 0.0
    %1665 = vmatpush1.msra.mxu0 0.0
    %1666 = vmatprep.subr.mxu0 0.0
    %1667 = vmatpush1.msra.mxu0 0.0
    %1668 = vmatprep.subr.mxu0 0.0
    %1669 = vmatpush1.msra.mxu0 0.0
    %1670 = vmatprep.subr.mxu0 0.0
    %1671 = vmatpush1.msra.mxu0 0.0
    %1672 = vmatprep.subr.mxu0 0.0
    %1673 = vmatpush1.msra.mxu0 0.0
    %1674 = vmatprep.subr.mxu0 0.0
    %1675 = vmatpush1.msra.mxu0 0.0
    %1676 = vmatprep.subr.mxu0 0.0
    %1677 = vmatpush1.msra.mxu0 0.0
    %1678 = vmatprep.subr.mxu0 0.0
    %1679 = vmatpush1.msra.mxu0 0.0
    %1680 = vmatprep.mubr.f32.mxu0 0.0
    %1681 = vmatmul.mubr.f32.gmra.mrb[0].mxu0 %v1611
    %v1682 = vpop.f32.mrb[0].mxu0
    %v1683 = vadd.f32 0.0, %v1682
    %v1684 = vpop.f32.mrb[0].mxu0
    %1685 = vmatprep.mubr.f32.mxu0 0.0
    %1686 = vmatmul.mubr.f32.gmra.mrb[0].mxu0 %v1614
    %v1687 = vpop.f32.mrb[0].mxu0
    %v1688 = vadd.f32 0.0, %v1687
    %v1689 = vpop.f32.mrb[0].mxu0
    %1690 = vdwg.mxu0
    %v1691 = vld [vmem:[#allocation13] sm:$0xff]
    %v1692 = vld [vmem:[#allocation13 + $0x8] sm:$0xff]
    %v1694 = vsel %vm181, %v1691, 0
    %v1697 = vsel %vm181, %v1692, 0
    %1699 = vmatprep.subr.mxu0 0.0
    %1700 = vmatpush1.msra.mxu0 %v1600
    %1701 = vmatprep.subr.mxu0 0.0
    %1702 = vmatpush1.msra.mxu0 %v1601
    %1703 = vmatprep.subr.mxu0 0.0
    %1704 = vmatpush1.msra.mxu0 %v1602
    %1705 = vmatprep.subr.mxu0 0.0
    %1706 = vmatpush1.msra.mxu0 %v1603
    %1707 = vmatprep.subr.mxu0 0.0
    %1708 = vmatpush1.msra.mxu0 0.0
    %1709 = vmatprep.subr.mxu0 0.0
    %1710 = vmatpush1.msra.mxu0 0.0
    %1711 = vmatprep.subr.mxu0 0.0
    %1712 = vmatpush1.msra.mxu0 0.0
    %1713 = vmatprep.subr.mxu0 0.0
    %1714 = vmatpush1.msra.mxu0 0.0
    %1715 = vmatprep.subr.mxu0 0.0
    %1716 = vmatpush1.msra.mxu0 0.0
    %1717 = vmatprep.subr.mxu0 0.0
    %1718 = vmatpush1.msra.mxu0 0.0
    %1719 = vmatprep.subr.mxu0 0.0
    %1720 = vmatpush1.msra.mxu0 0.0
    %1721 = vmatprep.subr.mxu0 0.0
    %1722 = vmatpush1.msra.mxu0 0.0
    %1723 = vmatprep.subr.mxu0 0.0
    %1724 = vmatpush1.msra.mxu0 0.0
    %1725 = vmatprep.subr.mxu0 0.0
    %1726 = vmatpush1.msra.mxu0 0.0
    %1727 = vmatprep.subr.mxu0 0.0
    %1728 = vmatpush1.msra.mxu0 0.0
    %1729 = vmatprep.subr.mxu0 0.0
    %1730 = vmatpush1.msra.mxu0 0.0
    %1731 = vmatprep.subr.mxu0 0.0
    %1732 = vmatpush1.msra.mxu0 0.0
    %1733 = vmatprep.subr.mxu0 0.0
    %1734 = vmatpush1.msra.mxu0 0.0
    %1735 = vmatprep.subr.mxu0 0.0
    %1736 = vmatpush1.msra.mxu0 0.0
    %1737 = vmatprep.subr.mxu0 0.0
    %1738 = vmatpush1.msra.mxu0 0.0
    %1739 = vmatprep.subr.mxu0 0.0
    %1740 = vmatpush1.msra.mxu0 0.0
    %1741 = vmatprep.subr.mxu0 0.0
    %1742 = vmatpush1.msra.mxu0 0.0
    %1743 = vmatprep.subr.mxu0 0.0
    %1744 = vmatpush1.msra.mxu0 0.0
    %1745 = vmatprep.subr.mxu0 0.0
    %1746 = vmatpush1.msra.mxu0 0.0
    %1747 = vmatprep.subr.mxu0 0.0
    %1748 = vmatpush1.msra.mxu0 0.0
    %1749 = vmatprep.subr.mxu0 0.0
    %1750 = vmatpush1.msra.mxu0 0.0
    %1751 = vmatprep.subr.mxu0 0.0
    %1752 = vmatpush1.msra.mxu0 0.0
    %1753 = vmatprep.subr.mxu0 0.0
    %1754 = vmatpush1.msra.mxu0 0.0
    %1755 = vmatprep.subr.mxu0 0.0
    %1756 = vmatpush1.msra.mxu0 0.0
    %1757 = vmatprep.subr.mxu0 0.0
    %1758 = vmatpush1.msra.mxu0 0.0
    %1759 = vmatprep.subr.mxu0 0.0
    %1760 = vmatpush1.msra.mxu0 0.0
    %1761 = vmatprep.subr.mxu0 0.0
    %1762 = vmatpush1.msra.mxu0 0.0
    %1763 = vmatprep.mubr.f32.mxu0 0.0
    %1764 = vmatmul.mubr.f32.gmra.mrb[0].mxu0 %v1694
    %v1765 = vpop.f32.mrb[0].mxu0
    %v1766 = vadd.f32 0.0, %v1765
    %v1767 = vpop.f32.mrb[0].mxu0
    %1768 = vmatprep.mubr.f32.mxu0 0.0
    %1769 = vmatmul.mubr.f32.gmra.mrb[0].mxu0 %v1697
    %v1770 = vpop.f32.mrb[0].mxu0
    %v1771 = vadd.f32 0.0, %v1770
    %v1772 = vpop.f32.mrb[0].mxu0
    %1773 = vdwg.mxu0
    %v1774 = vmax.f32 %v1683, %v1766
    %v1775 = vmax.f32 %v1688, %v1771
    %v1776 = vld [vmem:[%s14] sm:$0xff]
    %v1777 = vld [vmem:[%s14 + $0x8] sm:$0xff]
    %v1778 = vld [vmem:[%s14 + $0x10] sm:$0xff]
    %v1779 = vld [vmem:[%s14 + $0x18] sm:$0xff]
    %v1780 = vld [vmem:[%s14 + $0x20] sm:$0xff]
    %v1781 = vld [vmem:[%s14 + $0x28] sm:$0xff]
    %v1782 = vld [vmem:[%s14 + $0x30] sm:$0xff]
    %v1783 = vld [vmem:[%s14 + $0x38] sm:$0xff]
    %v1784 = vld [vmem:[%s14 + $0x40] sm:$0xff]
    %v1785 = vld [vmem:[%s14 + $0x48] sm:$0xff]
    %v1786 = vld [vmem:[%s14 + $0x50] sm:$0xff]
    %v1787 = vld [vmem:[%s14 + $0x58] sm:$0xff]
    %v1788 = vld [vmem:[%s14 + $0x60] sm:$0xff]
    %v1789 = vld [vmem:[%s14 + $0x68] sm:$0xff]
    %v1790 = vld [vmem:[%s14 + $0x70] sm:$0xff]
    %v1791 = vld [vmem:[%s14 + $0x78] sm:$0xff]
    %1792 = vmatprep.subr.mxu0 0.0
    %1793 = vmatpush1.msra.mxu0 %v1776
    %1794 = vmatprep.subr.mxu0 0.0
    %1795 = vmatpush1.msra.mxu0 %v1777
    %1796 = vmatprep.subr.mxu0 0.0
    %1797 = vmatpush1.msra.mxu0 %v1778
    %1798 = vmatprep.subr.mxu0 0.0
    %1799 = vmatpush1.msra.mxu0 %v1779
    %1800 = vmatprep.subr.mxu0 0.0
    %1801 = vmatpush1.msra.mxu0 %v1780
    %1802 = vmatprep.subr.mxu0 0.0
    %1803 = vmatpush1.msra.mxu0 %v1781
    %1804 = vmatprep.subr.mxu0 0.0
    %1805 = vmatpush1.msra.mxu0 %v1782
    %1806 = vmatprep.subr.mxu0 0.0
    %1807 = vmatpush1.msra.mxu0 %v1783
    %1808 = vmatprep.subr.mxu0 0.0
    %1809 = vmatpush1.msra.mxu0 %v1784
    %1810 = vmatprep.subr.mxu0 0.0
    %1811 = vmatpush1.msra.mxu0 %v1785
    %1812 = vmatprep.subr.mxu0 0.0
    %1813 = vmatpush1.msra.mxu0 %v1786
    %1814 = vmatprep.subr.mxu0 0.0
    %1815 = vmatpush1.msra.mxu0 %v1787
    %1816 = vmatprep.subr.mxu0 0.0
    %1817 = vmatpush1.msra.mxu0 %v1788
    %1818 = vmatprep.subr.mxu0 0.0
    %1819 = vmatpush1.msra.mxu0 %v1789
    %1820 = vmatprep.subr.mxu0 0.0
    %1821 = vmatpush1.msra.mxu0 %v1790
    %1822 = vmatprep.subr.mxu0 0.0
    %1823 = vmatpush1.msra.mxu0 %v1791
    %1824 = vmatprep.subr.mxu0 0.0
    %1825 = vmatpush1.msra.mxu0 0.0
    %1826 = vmatprep.subr.mxu0 0.0
    %1827 = vmatpush1.msra.mxu0 0.0
    %1828 = vmatprep.subr.mxu0 0.0
    %1829 = vmatpush1.msra.mxu0 0.0
    %1830 = vmatprep.subr.mxu0 0.0
    %1831 = vmatpush1.msra.mxu0 0.0
    %1832 = vmatprep.subr.mxu0 0.0
    %1833 = vmatpush1.msra.mxu0 0.0
    %1834 = vmatprep.subr.mxu0 0.0
    %1835 = vmatpush1.msra.mxu0 0.0
    %1836 = vmatprep.subr.mxu0 0.0
    %1837 = vmatpush1.msra.mxu0 0.0
    %1838 = vmatprep.subr.mxu0 0.0
    %1839 = vmatpush1.msra.mxu0 0.0
    %1840 = vmatprep.subr.mxu0 0.0
    %1841 = vmatpush1.msra.mxu0 0.0
    %1842 = vmatprep.subr.mxu0 0.0
    %1843 = vmatpush1.msra.mxu0 0.0
    %1844 = vmatprep.subr.mxu0 0.0
    %1845 = vmatpush1.msra.mxu0 0.0
    %1846 = vmatprep.subr.mxu0 0.0
    %1847 = vmatpush1.msra.mxu0 0.0
    %1848 = vmatprep.subr.mxu0 0.0
    %1849 = vmatpush1.msra.mxu0 0.0
    %1850 = vmatprep.subr.mxu0 0.0
    %1851 = vmatpush1.msra.mxu0 0.0
    %1852 = vmatprep.subr.mxu0 0.0
    %1853 = vmatpush1.msra.mxu0 0.0
    %1854 = vmatprep.subr.mxu0 0.0
    %1855 = vmatpush1.msra.mxu0 0.0
    %1856 = vmatprep.mubr.f32.mxu0 0.0
    %1857 = vmatmul.mubr.f32.gmra.mrb[0].mxu0 %v1774
    %v1858 = vpop.f32.mrb[0].mxu0
    %v1859 = vadd.f32 0.0, %v1858
    %v1860 = vpop.f32.mrb[0].mxu0
    %1861 = vmatprep.mubr.f32.mxu0 0.0
    %1862 = vmatmul.mubr.f32.gmra.mrb[0].mxu0 %v1775
    %v1863 = vpop.f32.mrb[0].mxu0
    %v1864 = vadd.f32 0.0, %v1863
    %v1865 = vpop.f32.mrb[0].mxu0
    %1866 = vdwg.mxu0
    %v1867 = vld [vmem:[%s15] sm:$0xff]
    %v1868 = vld [vmem:[%s15 + $0x8] sm:$0xff]
    %v1869 = vld [vmem:[%s15 + $0x10] sm:$0xff]
    %v1870 = vld [vmem:[%s15 + $0x18] sm:$0xff]
    %v1871 = vld [vmem:[%s15 + $0x20] sm:$0xff]
    %v1872 = vld [vmem:[%s15 + $0x28] sm:$0xff]
    %v1873 = vld [vmem:[%s15 + $0x30] sm:$0xff]
    %v1874 = vld [vmem:[%s15 + $0x38] sm:$0xff]
    %v1875 = vld [vmem:[%s15 + $0x40] sm:$0xff]
    %v1876 = vld [vmem:[%s15 + $0x48] sm:$0xff]
    %v1877 = vld [vmem:[%s15 + $0x50] sm:$0xff]
    %v1878 = vld [vmem:[%s15 + $0x58] sm:$0xff]
    %v1879 = vld [vmem:[%s15 + $0x60] sm:$0xff]
    %v1880 = vld [vmem:[%s15 + $0x68] sm:$0xff]
    %v1881 = vld [vmem:[%s15 + $0x70] sm:$0xff]
    %v1882 = vld [vmem:[%s15 + $0x78] sm:$0xff]
    %1883 = vmatprep.subr.mxu0 0.0
    %1884 = vmatpush1.msra.mxu0 %v1867
    %1885 = vmatprep.subr.mxu0 0.0
    %1886 = vmatpush1.msra.mxu0 %v1868
    %1887 = vmatprep.subr.mxu0 0.0
    %1888 = vmatpush1.msra.mxu0 %v1869
    %1889 = vmatprep.subr.mxu0 0.0
    %1890 = vmatpush1.msra.mxu0 %v1870
    %1891 = vmatprep.subr.mxu0 0.0
    %1892 = vmatpush1.msra.mxu0 %v1871
    %1893 = vmatprep.subr.mxu0 0.0
    %1894 = vmatpush1.msra.mxu0 %v1872
    %1895 = vmatprep.subr.mxu0 0.0
    %1896 = vmatpush1.msra.mxu0 %v1873
    %1897 = vmatprep.subr.mxu0 0.0
    %1898 = vmatpush1.msra.mxu0 %v1874
    %1899 = vmatprep.subr.mxu0 0.0
    %1900 = vmatpush1.msra.mxu0 %v1875
    %1901 = vmatprep.subr.mxu0 0.0
    %1902 = vmatpush1.msra.mxu0 %v1876
    %1903 = vmatprep.subr.mxu0 0.0
    %1904 = vmatpush1.msra.mxu0 %v1877
    %1905 = vmatprep.subr.mxu0 0.0
    %1906 = vmatpush1.msra.mxu0 %v1878
    %1907 = vmatprep.subr.mxu0 0.0
    %1908 = vmatpush1.msra.mxu0 %v1879
    %1909 = vmatprep.subr.mxu0 0.0
    %1910 = vmatpush1.msra.mxu0 %v1880
    %1911 = vmatprep.subr.mxu0 0.0
    %1912 = vmatpush1.msra.mxu0 %v1881
    %1913 = vmatprep.subr.mxu0 0.0
    %1914 = vmatpush1.msra.mxu0 %v1882
    %1915 = vmatprep.subr.mxu0 0.0
    %1916 = vmatpush1.msra.mxu0 0.0
    %1917 = vmatprep.subr.mxu0 0.0
    %1918 = vmatpush1.msra.mxu0 0.0
    %1919 = vmatprep.subr.mxu0 0.0
    %1920 = vmatpush1.msra.mxu0 0.0
    %1921 = vmatprep.subr.mxu0 0.0
    %1922 = vmatpush1.msra.mxu0 0.0
    %1923 = vmatprep.subr.mxu0 0.0
    %1924 = vmatpush1.msra.mxu0 0.0
    %1925 = vmatprep.subr.mxu0 0.0
    %1926 = vmatpush1.msra.mxu0 0.0
    %1927 = vmatprep.subr.mxu0 0.0
    %1928 = vmatpush1.msra.mxu0 0.0
    %1929 = vmatprep.subr.mxu0 0.0
    %1930 = vmatpush1.msra.mxu0 0.0
    %1931 = vmatprep.subr.mxu0 0.0
    %1932 = vmatpush1.msra.mxu0 0.0
    %1933 = vmatprep.subr.mxu0 0.0
    %1934 = vmatpush1.msra.mxu0 0.0
    %1935 = vmatprep.subr.mxu0 0.0
    %1936 = vmatpush1.msra.mxu0 0.0
    %1937 = vmatprep.subr.mxu0 0.0
    %1938 = vmatpush1.msra.mxu0 0.0
    %1939 = vmatprep.subr.mxu0 0.0
    %1940 = vmatpush1.msra.mxu0 0.0
    %1941 = vmatprep.subr.mxu0 0.0
    %1942 = vmatpush1.msra.mxu0 0.0
    %1943 = vmatprep.subr.mxu0 0.0
    %1944 = vmatpush1.msra.mxu0 0.0
    %1945 = vmatprep.subr.mxu0 0.0
    %1946 = vmatpush1.msra.mxu0 0.0
    %1947 = vmatprep.mubr.f32.mxu0 0.0
    %1948 = vmatmul.mubr.f32.gmra.mrb[0].mxu0 %v1774
    %v1949 = vpop.f32.mrb[0].mxu0
    %v1950 = vadd.f32 0.0, %v1949
    %v1951 = vpop.f32.mrb[0].mxu0
    %1952 = vmatprep.mubr.f32.mxu0 0.0
    %1953 = vmatmul.mubr.f32.gmra.mrb[0].mxu0 %v1775
    %v1954 = vpop.f32.mrb[0].mxu0
    %v1955 = vadd.f32 0.0, %v1954
    %v1956 = vpop.f32.mrb[0].mxu0
    %1957 = vdwg.mxu0
    %v1958 = vmax.f32 %v1859, %v1950
    %v1959 = vmax.f32 %v1864, %v1955
    %1960 = vst.msk [vmem:[#allocation15] sm:$0xff] %vm393, %v1958
    %1961 = vst.msk [vmem:[#allocation15 + $0x8] sm:$0xff] %vm393, %v1959
    // Predicated region
    $region94: #{tpu_custom_call.1} parent=1 // pred_check
      _
    $region95: #{tpu_custom_call.1} parent=1 // pred_check_branch
      %1963 = sbr.rel (0) target = $region97
    $region96: #{tpu_custom_call.1} parent=1 // pred_region
      %s1965 = ssub.s32 512, 512
      %1966 = vsyncadd [#allocation4], %s1965
      %s1967 = sshll.u32 [#allocation14], 4
      %s1968 = int_to_ptr.vmem [resolvable:$true] %s1967
      %1973 = dma.vmem_to_hbm [thread:$0]  %s1968, 512, %s16, [#allocation4], 128, 128, 8
    $region97: #{tpu_custom_call.1} parent=1 // pred_fallthru
      _
    // Predicated region
    $region98: #{tpu_custom_call.1} parent=1 // pred_check
      _
    $region99: #{tpu_custom_call.1} parent=1 // pred_check_branch
      %1975 = sbr.rel (0) target = $region101
    $region100: #{tpu_custom_call.1} parent=1 // pred_region
      %s1977 = ssub.s32 256, 256
      %1978 = vsyncadd [#allocation16], %s1977
      %s1979 = sshll.u32 [#allocation15], 4
      %s1980 = int_to_ptr.vmem [resolvable:$true] %s1979
      %1985 = dma.vmem_to_hbm [thread:$0]  %s1980, 256, %s17, [#allocation16], 128, 128, 8
    $region101: #{tpu_custom_call.1} parent=1 // pred_fallthru
      _
    // Predicated region
    $region102: #{tpu_custom_call.1} parent=1 // pred_check
      _
    $region103: #{tpu_custom_call.1} parent=1 // pred_check_branch
      %1987 = sbr.rel (0) target = $region105
    $region104: #{tpu_custom_call.1} parent=1 // pred_region
      %1988 = dma.done [#allocation4], 512
    $region105: #{tpu_custom_call.1} parent=1 // pred_fallthru
      _
    // Predicated region
    $region106: #{tpu_custom_call.1} parent=1 // pred_check
      _
    $region107: #{tpu_custom_call.1} parent=1 // pred_check_branch
      %1990 = sbr.rel (0) target = $region109
    $region108: #{tpu_custom_call.1} parent=1 // pred_region
      %1991 = dma.done [#allocation16], 256
    $region109: #{tpu_custom_call.1} parent=1 // pred_fallthru
      _
    %1992 = vsyncpa [#allocation3], 1
    %1993 = vsyncpa [#allocation6], 1
    %1994 = vsyncpa [#allocation9], 1
    %1995 = vsyncpa [#allocation12], 1
    %1996 = vsyncpa [#allocation4], 1
    %1997 = vsyncpa [#allocation16], 1

</llo_original>
